<compile_context>
chip_gen: v5e
topology: v5e:2x2
jax: 0.10.0
libtpu: 0.0.40
codegen_flags: <defaults>
</compile_context>

<pallas_src>
import functools

import jax
import jax.numpy as jnp
import numpy as np
from jax.experimental import pallas as pl
from jax.experimental.pallas import tpu as pltpu

_TB = 8      # batch rows per grid step (sublane-aligned)
_LANE = 128  # pad feature dims to multiples of the TPU lane width


def _round_up(x, m):
    return ((x + m - 1) // m) * m


# ---------------------------------------------------------------------------
# Pallas kernel: full MappingNetwork forward for one batch tile.
# ---------------------------------------------------------------------------
def _mapping_kernel(z_ref, y_ref,
                    ws0, ws1, ws2, ws3,            # shared weights (Lp,Dp),(Dp,Dp)x3  bf16
                    bs0, bs1, bs2, bs3,            # shared biases  (1,Dp)             f32
                    wu0, wu1, wu2, wu3,            # unshared weights (num_domains,Dp,Dp) bf16
                    bu0, bu1, bu2, bu3,            # unshared biases  (num_domains,1,Dp)  f32
                    out_ref, *, num_domains):
    # ---- shared trunk: 4 x (Linear -> ReLU), bf16 MXU / f32 accumulate ----
    h = z_ref[...]                                                  # (TB, Lp) bf16
    for w_r, b_r in ((ws0, bs0), (ws1, bs1), (ws2, bs2), (ws3, bs3)):
        acc = jnp.dot(h, w_r[...], preferred_element_type=jnp.float32) + b_r[...]
        h = jnp.maximum(acc, 0.0).astype(jnp.bfloat16)

    # ---- unshared branches + per-sample domain selection ----
    y = y_ref[...]                                                  # (TB, 1) int32
    wu = (wu0, wu1, wu2, wu3)
    bu = (bu0, bu1, bu2, bu3)
    out = jnp.zeros(out_ref.shape, jnp.float32)
    for d in range(num_domains):                                    # static unroll
        t = h
        t_out = None
        for li in range(4):
            acc = jnp.dot(t, wu[li][d], preferred_element_type=jnp.float32) + bu[li][d]
            if li < 3:
                t = jnp.maximum(acc, 0.0).astype(jnp.bfloat16)      # ReLU after layers 0..2
            else:
                t_out = acc                                         # final Linear: no ReLU
        out = out + jnp.where(y == d, t_out, 0.0)                   # out[b] = branch_{y[b]}(h[b])
    out_ref[...] = out


# ---------------------------------------------------------------------------
# Wrapper: pad to lane-dense shapes, cast MXU operands to bf16, one pallas_call.
# ---------------------------------------------------------------------------
def mapping_network_forward(z, y, params):
    """z: (B, latent_dim) f32, y: (B,) int -> s: (B, style_dim) f32."""
    B, latent_dim = z.shape
    style_dim = params["shared"][0][1].shape[0]
    num_domains = len(params["unshared"])

    Lp = _round_up(latent_dim, _LANE)
    Dp = _round_up(style_dim, _LANE)
    Bp = _round_up(B, _TB)

    # lane-dense, bf16 operands (zero padding is exact through Linear + ReLU)
    z_p = jnp.pad(z, ((0, Bp - B), (0, Lp - latent_dim))).astype(jnp.bfloat16)
    y_p = jnp.pad(y.astype(jnp.int32), ((0, Bp - B),)).reshape(Bp, 1)

    def pad_w(w, ip, op):
        return jnp.pad(w, ((0, ip - w.shape[0]), (0, op - w.shape[1]))).astype(jnp.bfloat16)

    def pad_b(b, op):
        return jnp.pad(b, ((0, op - b.shape[0]),)).reshape(1, op).astype(jnp.float32)

    shared_w, shared_b = [], []
    for li, (w, b) in enumerate(params["shared"]):
        shared_w.append(pad_w(w, Lp if li == 0 else Dp, Dp))
        shared_b.append(pad_b(b, Dp))

    unshared_w, unshared_b = [], []
    for li in range(4):
        w_stack = jnp.stack([params["unshared"][d][li][0] for d in range(num_domains)])
        b_stack = jnp.stack([params["unshared"][d][li][1] for d in range(num_domains)])
        w_stack = jnp.pad(
            w_stack, ((0, 0), (0, Dp - style_dim), (0, Dp - style_dim))
        ).astype(jnp.bfloat16)
        b_stack = jnp.pad(b_stack, ((0, 0), (0, Dp - style_dim))).reshape(
            num_domains, 1, Dp
        ).astype(jnp.float32)
        unshared_w.append(w_stack)
        unshared_b.append(b_stack)

    const2 = lambda i: (0, 0)
    const3 = lambda i: (0, 0, 0)
    in_specs = (
        [pl.BlockSpec((_TB, Lp), lambda i: (i, 0)),              # z tile
         pl.BlockSpec((_TB, 1), lambda i: (i, 0)),               # y tile
         pl.BlockSpec((Lp, Dp), const2)]                         # shared W0
        + [pl.BlockSpec((Dp, Dp), const2)] * 3                   # shared W1..3
        + [pl.BlockSpec((1, Dp), const2)] * 4                    # shared b0..3
        + [pl.BlockSpec((num_domains, Dp, Dp), const3)] * 4      # unshared W (all domains)
        + [pl.BlockSpec((num_domains, 1, Dp), const3)] * 4       # unshared b (all domains)
    )

    out = pl.pallas_call(
        functools.partial(_mapping_kernel, num_domains=num_domains),
        out_shape=jax.ShapeDtypeStruct((Bp, Dp), jnp.float32),
        grid=(Bp // _TB,),
        in_specs=in_specs,
        out_specs=pl.BlockSpec((_TB, Dp), lambda i: (i, 0)),
        compiler_params=pltpu.CompilerParams(
            dimension_semantics=("parallel",),
        ),
    )(z_p, y_p, *shared_w, *shared_b, *unshared_w, *unshared_b)

    return out[:B, :style_dim]


# ---------------------------------------------------------------------------
# Deterministic synthetic parameters (layout: W is (fan_in, fan_out), fwd = x @ W + b)
# ---------------------------------------------------------------------------
def build_params(key, latent_dim, style_dim, num_domains):
    n_linear = 4 + 4 * num_domains
    keys = iter(jax.random.split(key, 2 * n_linear))

    def linear(fan_in, fan_out):
        kw, kb = next(keys), next(keys)
        w = jax.random.normal(kw, (fan_in, fan_out), jnp.float32) * np.sqrt(2.0 / fan_in)
        b = 0.05 * jax.random.normal(kb, (fan_out,), jnp.float32)
        return w, b

    shared = [linear(latent_dim, style_dim)] + [linear(style_dim, style_dim) for _ in range(3)]
    unshared = [[linear(style_dim, style_dim) for _ in range(4)] for _ in range(num_domains)]
    return {"shared": shared, "unshared": unshared}


# ---------------------------------------------------------------------------
# Pure-JAX f32 reference (mirrors the PyTorch forward exactly)
# ---------------------------------------------------------------------------
def mapping_network_reference(z, y, params):
    h = z
    for w, b in params["shared"]:
        h = jnp.maximum(h @ w + b, 0.0)
    branches = []
    for layers in params["unshared"]:
        t = h
        for li, (w, b) in enumerate(layers):
            t = t @ w + b
            if li < 3:
                t = jnp.maximum(t, 0.0)
        branches.append(t)
    out = jnp.stack(branches, axis=1)                 # (B, num_domains, style_dim)
    return out[jnp.arange(z.shape[0]), y]             # s = out[idx, y]


if __name__ == "__main__":
    latent_dim, style_dim, num_domains, batch = 16, 64, 3, 16
    key = jax.random.PRNGKey(0)
    k_param, k_z, k_y = jax.random.split(key, 3)

    params = build_params(k_param, latent_dim, style_dim, num_domains)
    z = jax.random.normal(k_z, (batch, latent_dim), jnp.float32)
    y = jax.random.randint(k_y, (batch,), 0, num_domains, dtype=jnp.int32)

    fwd = jax.jit(mapping_network_forward)
    s = jax.block_until_ready(fwd(z, y, params))
    assert s.shape == (batch, style_dim), s.shape
    assert bool(jnp.all(jnp.isfinite(s)))

    ref = mapping_network_reference(z, y, params)
    # bf16 MXU operands vs f32 reference -> loose tolerance
    np.testing.assert_allclose(np.asarray(s), np.asarray(ref), rtol=1e-1, atol=1e-1)
    print("KERNEL_OK")
</pallas_src>

<mosaic_0001>
module attributes {stable_mosaic.version = 11 : i64} {
  func.func @_mapping_kernel(%arg0: i32, %arg1: memref<8x128xbf16, #tpu.memory_space<vmem>>, %arg2: memref<8x1xi32, #tpu.memory_space<vmem>>, %arg3: memref<128x128xbf16, #tpu.memory_space<vmem>>, %arg4: memref<128x128xbf16, #tpu.memory_space<vmem>>, %arg5: memref<128x128xbf16, #tpu.memory_space<vmem>>, %arg6: memref<128x128xbf16, #tpu.memory_space<vmem>>, %arg7: memref<1x128xf32, #tpu.memory_space<vmem>>, %arg8: memref<1x128xf32, #tpu.memory_space<vmem>>, %arg9: memref<1x128xf32, #tpu.memory_space<vmem>>, %arg10: memref<1x128xf32, #tpu.memory_space<vmem>>, %arg11: memref<3x128x128xbf16, #tpu.memory_space<vmem>>, %arg12: memref<3x128x128xbf16, #tpu.memory_space<vmem>>, %arg13: memref<3x128x128xbf16, #tpu.memory_space<vmem>>, %arg14: memref<3x128x128xbf16, #tpu.memory_space<vmem>>, %arg15: memref<3x1x128xf32, #tpu.memory_space<vmem>>, %arg16: memref<3x1x128xf32, #tpu.memory_space<vmem>>, %arg17: memref<3x1x128xf32, #tpu.memory_space<vmem>>, %arg18: memref<3x1x128xf32, #tpu.memory_space<vmem>>, %arg19: memref<8x128xf32, #tpu.memory_space<vmem>>) attributes {dimension_semantics = [#tpu.dimension_semantics<parallel>], iteration_bounds = array<i64: 2>, scalar_prefetch = 0 : i64, scratch_operands = 0 : i64, tpu.core_type = #tpu.core_type<tc>, window_params = [{transform_indices = @transform_0, window_bounds = array<i64: 8, 128>}, {transform_indices = @transform_1, window_bounds = array<i64: 8, 1>}, {pipeline_mode = #tpu.pipeline_mode<synchronous>, transform_indices = @transform_2, window_bounds = array<i64: 128, 128>}, {pipeline_mode = #tpu.pipeline_mode<synchronous>, transform_indices = @transform_3, window_bounds = array<i64: 128, 128>}, {pipeline_mode = #tpu.pipeline_mode<synchronous>, transform_indices = @transform_4, window_bounds = array<i64: 128, 128>}, {pipeline_mode = #tpu.pipeline_mode<synchronous>, transform_indices = @transform_5, window_bounds = array<i64: 128, 128>}, {pipeline_mode = #tpu.pipeline_mode<synchronous>, transform_indices = @transform_6, window_bounds = array<i64: 1, 128>}, {pipeline_mode = #tpu.pipeline_mode<synchronous>, transform_indices = @transform_7, window_bounds = array<i64: 1, 128>}, {pipeline_mode = #tpu.pipeline_mode<synchronous>, transform_indices = @transform_8, window_bounds = array<i64: 1, 128>}, {pipeline_mode = #tpu.pipeline_mode<synchronous>, transform_indices = @transform_9, window_bounds = array<i64: 1, 128>}, {pipeline_mode = #tpu.pipeline_mode<synchronous>, transform_indices = @transform_10, window_bounds = array<i64: 3, 128, 128>}, {pipeline_mode = #tpu.pipeline_mode<synchronous>, transform_indices = @transform_11, window_bounds = array<i64: 3, 128, 128>}, {pipeline_mode = #tpu.pipeline_mode<synchronous>, transform_indices = @transform_12, window_bounds = array<i64: 3, 128, 128>}, {pipeline_mode = #tpu.pipeline_mode<synchronous>, transform_indices = @transform_13, window_bounds = array<i64: 3, 128, 128>}, {pipeline_mode = #tpu.pipeline_mode<synchronous>, transform_indices = @transform_14, window_bounds = array<i64: 3, 1, 128>}, {pipeline_mode = #tpu.pipeline_mode<synchronous>, transform_indices = @transform_15, window_bounds = array<i64: 3, 1, 128>}, {pipeline_mode = #tpu.pipeline_mode<synchronous>, transform_indices = @transform_16, window_bounds = array<i64: 3, 1, 128>}, {pipeline_mode = #tpu.pipeline_mode<synchronous>, transform_indices = @transform_17, window_bounds = array<i64: 3, 1, 128>}, {transform_indices = @transform_18, window_bounds = array<i64: 8, 128>}]} {
    %c0 = arith.constant 0 : index
    %c0_0 = arith.constant 0 : index
    %0 = vector.load %arg1[%c0, %c0_0] : memref<8x128xbf16, #tpu.memory_space<vmem>>, vector<8x128xbf16>
    %c0_1 = arith.constant 0 : index
    %c0_2 = arith.constant 0 : index
    %1 = vector.load %arg3[%c0_1, %c0_2] : memref<128x128xbf16, #tpu.memory_space<vmem>>, vector<128x128xbf16>
    %cst = arith.constant dense<0.000000e+00> : vector<8x128xf32>
    %2 = tpu.matmul %0, %1, %cst {dimension_numbers = #tpu.dot_dimension_numbers<[1], [0], [0], [1], [0, 0, 1, 1], [], []>} : vector<8x128xbf16>, vector<128x128xbf16>, vector<8x128xf32> -> vector<8x128xf32>
    %c0_3 = arith.constant 0 : index
    %c0_4 = arith.constant 0 : index
    %3 = vector.load %arg7[%c0_3, %c0_4] : memref<1x128xf32, #tpu.memory_space<vmem>>, vector<1x128xf32>
    %4 = vector.broadcast %3 : vector<1x128xf32> to vector<8x128xf32>
    %5 = arith.addf %2, %4 : vector<8x128xf32>
    %cst_5 = arith.constant 0.000000e+00 : f32
    %6 = vector.broadcast %cst_5 : f32 to vector<8x128xf32>
    %7 = arith.maximumf %5, %6 : vector<8x128xf32>
    %8 = arith.truncf %7 : vector<8x128xf32> to vector<8x128xbf16>
    %c0_6 = arith.constant 0 : index
    %c0_7 = arith.constant 0 : index
    %9 = vector.load %arg4[%c0_6, %c0_7] : memref<128x128xbf16, #tpu.memory_space<vmem>>, vector<128x128xbf16>
    %cst_8 = arith.constant dense<0.000000e+00> : vector<8x128xf32>
    %10 = tpu.matmul %8, %9, %cst_8 {dimension_numbers = #tpu.dot_dimension_numbers<[1], [0], [0], [1], [0, 0, 1, 1], [], []>} : vector<8x128xbf16>, vector<128x128xbf16>, vector<8x128xf32> -> vector<8x128xf32>
    %c0_9 = arith.constant 0 : index
    %c0_10 = arith.constant 0 : index
    %11 = vector.load %arg8[%c0_9, %c0_10] : memref<1x128xf32, #tpu.memory_space<vmem>>, vector<1x128xf32>
    %12 = vector.broadcast %11 : vector<1x128xf32> to vector<8x128xf32>
    %13 = arith.addf %10, %12 : vector<8x128xf32>
    %cst_11 = arith.constant 0.000000e+00 : f32
    %14 = vector.broadcast %cst_11 : f32 to vector<8x128xf32>
    %15 = arith.maximumf %13, %14 : vector<8x128xf32>
    %16 = arith.truncf %15 : vector<8x128xf32> to vector<8x128xbf16>
    %c0_12 = arith.constant 0 : index
    %c0_13 = arith.constant 0 : index
    %17 = vector.load %arg5[%c0_12, %c0_13] : memref<128x128xbf16, #tpu.memory_space<vmem>>, vector<128x128xbf16>
    %cst_14 = arith.constant dense<0.000000e+00> : vector<8x128xf32>
    %18 = tpu.matmul %16, %17, %cst_14 {dimension_numbers = #tpu.dot_dimension_numbers<[1], [0], [0], [1], [0, 0, 1, 1], [], []>} : vector<8x128xbf16>, vector<128x128xbf16>, vector<8x128xf32> -> vector<8x128xf32>
    %c0_15 = arith.constant 0 : index
    %c0_16 = arith.constant 0 : index
    %19 = vector.load %arg9[%c0_15, %c0_16] : memref<1x128xf32, #tpu.memory_space<vmem>>, vector<1x128xf32>
    %20 = vector.broadcast %19 : vector<1x128xf32> to vector<8x128xf32>
    %21 = arith.addf %18, %20 : vector<8x128xf32>
    %cst_17 = arith.constant 0.000000e+00 : f32
    %22 = vector.broadcast %cst_17 : f32 to vector<8x128xf32>
    %23 = arith.maximumf %21, %22 : vector<8x128xf32>
    %24 = arith.truncf %23 : vector<8x128xf32> to vector<8x128xbf16>
    %c0_18 = arith.constant 0 : index
    %c0_19 = arith.constant 0 : index
    %25 = vector.load %arg6[%c0_18, %c0_19] : memref<128x128xbf16, #tpu.memory_space<vmem>>, vector<128x128xbf16>
    %cst_20 = arith.constant dense<0.000000e+00> : vector<8x128xf32>
    %26 = tpu.matmul %24, %25, %cst_20 {dimension_numbers = #tpu.dot_dimension_numbers<[1], [0], [0], [1], [0, 0, 1, 1], [], []>} : vector<8x128xbf16>, vector<128x128xbf16>, vector<8x128xf32> -> vector<8x128xf32>
    %c0_21 = arith.constant 0 : index
    %c0_22 = arith.constant 0 : index
    %27 = vector.load %arg10[%c0_21, %c0_22] : memref<1x128xf32, #tpu.memory_space<vmem>>, vector<1x128xf32>
    %28 = vector.broadcast %27 : vector<1x128xf32> to vector<8x128xf32>
    %29 = arith.addf %26, %28 : vector<8x128xf32>
    %cst_23 = arith.constant 0.000000e+00 : f32
    %30 = vector.broadcast %cst_23 : f32 to vector<8x128xf32>
    %31 = arith.maximumf %29, %30 : vector<8x128xf32>
    %32 = arith.truncf %31 : vector<8x128xf32> to vector<8x128xbf16>
    %c0_24 = arith.constant 0 : index
    %c0_25 = arith.constant 0 : index
    %33 = vector.load %arg2[%c0_24, %c0_25] : memref<8x1xi32, #tpu.memory_space<vmem>>, vector<8x1xi32>
    %cst_26 = arith.constant 0.000000e+00 : f32
    %34 = vector.broadcast %cst_26 : f32 to vector<8x128xf32>
    %c0_27 = arith.constant 0 : index
    %c0_28 = arith.constant 0 : index
    %c0_29 = arith.constant 0 : index
    %35 = vector.load %arg11[%c0_27, %c0_28, %c0_29] : memref<3x128x128xbf16, #tpu.memory_space<vmem>>, vector<1x128x128xbf16>
    %36 = vector.shape_cast %35 : vector<1x128x128xbf16> to vector<128x128xbf16>
    %cst_30 = arith.constant dense<0.000000e+00> : vector<8x128xf32>
    %37 = tpu.matmul %32, %36, %cst_30 {dimension_numbers = #tpu.dot_dimension_numbers<[1], [0], [0], [1], [0, 0, 1, 1], [], []>} : vector<8x128xbf16>, vector<128x128xbf16>, vector<8x128xf32> -> vector<8x128xf32>
    %c0_31 = arith.constant 0 : index
    %c0_32 = arith.constant 0 : index
    %c0_33 = arith.constant 0 : index
    %38 = vector.load %arg15[%c0_31, %c0_32, %c0_33] : memref<3x1x128xf32, #tpu.memory_space<vmem>>, vector<1x1x128xf32>
    %39 = vector.shape_cast %38 : vector<1x1x128xf32> to vector<1x128xf32>
    %40 = vector.broadcast %39 : vector<1x128xf32> to vector<8x128xf32>
    %41 = arith.addf %37, %40 : vector<8x128xf32>
    %cst_34 = arith.constant 0.000000e+00 : f32
    %42 = vector.broadcast %cst_34 : f32 to vector<8x128xf32>
    %43 = arith.maximumf %41, %42 : vector<8x128xf32>
    %44 = arith.truncf %43 : vector<8x128xf32> to vector<8x128xbf16>
    %c0_35 = arith.constant 0 : index
    %c0_36 = arith.constant 0 : index
    %c0_37 = arith.constant 0 : index
    %45 = vector.load %arg12[%c0_35, %c0_36, %c0_37] : memref<3x128x128xbf16, #tpu.memory_space<vmem>>, vector<1x128x128xbf16>
    %46 = vector.shape_cast %45 : vector<1x128x128xbf16> to vector<128x128xbf16>
    %cst_38 = arith.constant dense<0.000000e+00> : vector<8x128xf32>
    %47 = tpu.matmul %44, %46, %cst_38 {dimension_numbers = #tpu.dot_dimension_numbers<[1], [0], [0], [1], [0, 0, 1, 1], [], []>} : vector<8x128xbf16>, vector<128x128xbf16>, vector<8x128xf32> -> vector<8x128xf32>
    %c0_39 = arith.constant 0 : index
    %c0_40 = arith.constant 0 : index
    %c0_41 = arith.constant 0 : index
    %48 = vector.load %arg16[%c0_39, %c0_40, %c0_41] : memref<3x1x128xf32, #tpu.memory_space<vmem>>, vector<1x1x128xf32>
    %49 = vector.shape_cast %48 : vector<1x1x128xf32> to vector<1x128xf32>
    %50 = vector.broadcast %49 : vector<1x128xf32> to vector<8x128xf32>
    %51 = arith.addf %47, %50 : vector<8x128xf32>
    %cst_42 = arith.constant 0.000000e+00 : f32
    %52 = vector.broadcast %cst_42 : f32 to vector<8x128xf32>
    %53 = arith.maximumf %51, %52 : vector<8x128xf32>
    %54 = arith.truncf %53 : vector<8x128xf32> to vector<8x128xbf16>
    %c0_43 = arith.constant 0 : index
    %c0_44 = arith.constant 0 : index
    %c0_45 = arith.constant 0 : index
    %55 = vector.load %arg13[%c0_43, %c0_44, %c0_45] : memref<3x128x128xbf16, #tpu.memory_space<vmem>>, vector<1x128x128xbf16>
    %56 = vector.shape_cast %55 : vector<1x128x128xbf16> to vector<128x128xbf16>
    %cst_46 = arith.constant dense<0.000000e+00> : vector<8x128xf32>
    %57 = tpu.matmul %54, %56, %cst_46 {dimension_numbers = #tpu.dot_dimension_numbers<[1], [0], [0], [1], [0, 0, 1, 1], [], []>} : vector<8x128xbf16>, vector<128x128xbf16>, vector<8x128xf32> -> vector<8x128xf32>
    %c0_47 = arith.constant 0 : index
    %c0_48 = arith.constant 0 : index
    %c0_49 = arith.constant 0 : index
    %58 = vector.load %arg17[%c0_47, %c0_48, %c0_49] : memref<3x1x128xf32, #tpu.memory_space<vmem>>, vector<1x1x128xf32>
    %59 = vector.shape_cast %58 : vector<1x1x128xf32> to vector<1x128xf32>
    %60 = vector.broadcast %59 : vector<1x128xf32> to vector<8x128xf32>
    %61 = arith.addf %57, %60 : vector<8x128xf32>
    %cst_50 = arith.constant 0.000000e+00 : f32
    %62 = vector.broadcast %cst_50 : f32 to vector<8x128xf32>
    %63 = arith.maximumf %61, %62 : vector<8x128xf32>
    %64 = arith.truncf %63 : vector<8x128xf32> to vector<8x128xbf16>
    %c0_51 = arith.constant 0 : index
    %c0_52 = arith.constant 0 : index
    %c0_53 = arith.constant 0 : index
    %65 = vector.load %arg14[%c0_51, %c0_52, %c0_53] : memref<3x128x128xbf16, #tpu.memory_space<vmem>>, vector<1x128x128xbf16>
    %66 = vector.shape_cast %65 : vector<1x128x128xbf16> to vector<128x128xbf16>
    %cst_54 = arith.constant dense<0.000000e+00> : vector<8x128xf32>
    %67 = tpu.matmul %64, %66, %cst_54 {dimension_numbers = #tpu.dot_dimension_numbers<[1], [0], [0], [1], [0, 0, 1, 1], [], []>} : vector<8x128xbf16>, vector<128x128xbf16>, vector<8x128xf32> -> vector<8x128xf32>
    %c0_55 = arith.constant 0 : index
    %c0_56 = arith.constant 0 : index
    %c0_57 = arith.constant 0 : index
    %68 = vector.load %arg18[%c0_55, %c0_56, %c0_57] : memref<3x1x128xf32, #tpu.memory_space<vmem>>, vector<1x1x128xf32>
    %69 = vector.shape_cast %68 : vector<1x1x128xf32> to vector<1x128xf32>
    %70 = vector.broadcast %69 : vector<1x128xf32> to vector<8x128xf32>
    %71 = arith.addf %67, %70 : vector<8x128xf32>
    %c0_i32 = arith.constant 0 : i32
    %72 = vector.broadcast %c0_i32 : i32 to vector<8x1xi32>
    %73 = arith.cmpi eq, %33, %72 : vector<8x1xi32>
    %cst_58 = arith.constant 0.000000e+00 : f32
    %74 = vector.shape_cast %73 : vector<8x1xi1> to vector<8x1xi1>
    %75 = vector.broadcast %74 : vector<8x1xi1> to vector<8x128xi1>
    %76 = vector.broadcast %cst_58 : f32 to vector<8x128xf32>
    %77 = arith.select %75, %71, %76 : vector<8x128xi1>, vector<8x128xf32>
    %78 = arith.addf %34, %77 : vector<8x128xf32>
    %c1 = arith.constant 1 : index
    %c0_59 = arith.constant 0 : index
    %c0_60 = arith.constant 0 : index
    %79 = vector.load %arg11[%c1, %c0_59, %c0_60] : memref<3x128x128xbf16, #tpu.memory_space<vmem>>, vector<1x128x128xbf16>
    %80 = vector.shape_cast %79 : vector<1x128x128xbf16> to vector<128x128xbf16>
    %cst_61 = arith.constant dense<0.000000e+00> : vector<8x128xf32>
    %81 = tpu.matmul %32, %80, %cst_61 {dimension_numbers = #tpu.dot_dimension_numbers<[1], [0], [0], [1], [0, 0, 1, 1], [], []>} : vector<8x128xbf16>, vector<128x128xbf16>, vector<8x128xf32> -> vector<8x128xf32>
    %c1_62 = arith.constant 1 : index
    %c0_63 = arith.constant 0 : index
    %c0_64 = arith.constant 0 : index
    %82 = vector.load %arg15[%c1_62, %c0_63, %c0_64] : memref<3x1x128xf32, #tpu.memory_space<vmem>>, vector<1x1x128xf32>
    %83 = vector.shape_cast %82 : vector<1x1x128xf32> to vector<1x128xf32>
    %84 = vector.broadcast %83 : vector<1x128xf32> to vector<8x128xf32>
    %85 = arith.addf %81, %84 : vector<8x128xf32>
    %cst_65 = arith.constant 0.000000e+00 : f32
    %86 = vector.broadcast %cst_65 : f32 to vector<8x128xf32>
    %87 = arith.maximumf %85, %86 : vector<8x128xf32>
    %88 = arith.truncf %87 : vector<8x128xf32> to vector<8x128xbf16>
    %c1_66 = arith.constant 1 : index
    %c0_67 = arith.constant 0 : index
    %c0_68 = arith.constant 0 : index
    %89 = vector.load %arg12[%c1_66, %c0_67, %c0_68] : memref<3x128x128xbf16, #tpu.memory_space<vmem>>, vector<1x128x128xbf16>
    %90 = vector.shape_cast %89 : vector<1x128x128xbf16> to vector<128x128xbf16>
    %cst_69 = arith.constant dense<0.000000e+00> : vector<8x128xf32>
    %91 = tpu.matmul %88, %90, %cst_69 {dimension_numbers = #tpu.dot_dimension_numbers<[1], [0], [0], [1], [0, 0, 1, 1], [], []>} : vector<8x128xbf16>, vector<128x128xbf16>, vector<8x128xf32> -> vector<8x128xf32>
    %c1_70 = arith.constant 1 : index
    %c0_71 = arith.constant 0 : index
    %c0_72 = arith.constant 0 : index
    %92 = vector.load %arg16[%c1_70, %c0_71, %c0_72] : memref<3x1x128xf32, #tpu.memory_space<vmem>>, vector<1x1x128xf32>
    %93 = vector.shape_cast %92 : vector<1x1x128xf32> to vector<1x128xf32>
    %94 = vector.broadcast %93 : vector<1x128xf32> to vector<8x128xf32>
    %95 = arith.addf %91, %94 : vector<8x128xf32>
    %cst_73 = arith.constant 0.000000e+00 : f32
    %96 = vector.broadcast %cst_73 : f32 to vector<8x128xf32>
    %97 = arith.maximumf %95, %96 : vector<8x128xf32>
    %98 = arith.truncf %97 : vector<8x128xf32> to vector<8x128xbf16>
    %c1_74 = arith.constant 1 : index
    %c0_75 = arith.constant 0 : index
    %c0_76 = arith.constant 0 : index
    %99 = vector.load %arg13[%c1_74, %c0_75, %c0_76] : memref<3x128x128xbf16, #tpu.memory_space<vmem>>, vector<1x128x128xbf16>
    %100 = vector.shape_cast %99 : vector<1x128x128xbf16> to vector<128x128xbf16>
    %cst_77 = arith.constant dense<0.000000e+00> : vector<8x128xf32>
    %101 = tpu.matmul %98, %100, %cst_77 {dimension_numbers = #tpu.dot_dimension_numbers<[1], [0], [0], [1], [0, 0, 1, 1], [], []>} : vector<8x128xbf16>, vector<128x128xbf16>, vector<8x128xf32> -> vector<8x128xf32>
    %c1_78 = arith.constant 1 : index
    %c0_79 = arith.constant 0 : index
    %c0_80 = arith.constant 0 : index
    %102 = vector.load %arg17[%c1_78, %c0_79, %c0_80] : memref<3x1x128xf32, #tpu.memory_space<vmem>>, vector<1x1x128xf32>
    %103 = vector.shape_cast %102 : vector<1x1x128xf32> to vector<1x128xf32>
    %104 = vector.broadcast %103 : vector<1x128xf32> to vector<8x128xf32>
    %105 = arith.addf %101, %104 : vector<8x128xf32>
    %cst_81 = arith.constant 0.000000e+00 : f32
    %106 = vector.broadcast %cst_81 : f32 to vector<8x128xf32>
    %107 = arith.maximumf %105, %106 : vector<8x128xf32>
    %108 = arith.truncf %107 : vector<8x128xf32> to vector<8x128xbf16>
    %c1_82 = arith.constant 1 : index
    %c0_83 = arith.constant 0 : index
    %c0_84 = arith.constant 0 : index
    %109 = vector.load %arg14[%c1_82, %c0_83, %c0_84] : memref<3x128x128xbf16, #tpu.memory_space<vmem>>, vector<1x128x128xbf16>
    %110 = vector.shape_cast %109 : vector<1x128x128xbf16> to vector<128x128xbf16>
    %cst_85 = arith.constant dense<0.000000e+00> : vector<8x128xf32>
    %111 = tpu.matmul %108, %110, %cst_85 {dimension_numbers = #tpu.dot_dimension_numbers<[1], [0], [0], [1], [0, 0, 1, 1], [], []>} : vector<8x128xbf16>, vector<128x128xbf16>, vector<8x128xf32> -> vector<8x128xf32>
    %c1_86 = arith.constant 1 : index
    %c0_87 = arith.constant 0 : index
    %c0_88 = arith.constant 0 : index
    %112 = vector.load %arg18[%c1_86, %c0_87, %c0_88] : memref<3x1x128xf32, #tpu.memory_space<vmem>>, vector<1x1x128xf32>
    %113 = vector.shape_cast %112 : vector<1x1x128xf32> to vector<1x128xf32>
    %114 = vector.broadcast %113 : vector<1x128xf32> to vector<8x128xf32>
    %115 = arith.addf %111, %114 : vector<8x128xf32>
    %c1_i32 = arith.constant 1 : i32
    %116 = vector.broadcast %c1_i32 : i32 to vector<8x1xi32>
    %117 = arith.cmpi eq, %33, %116 : vector<8x1xi32>
    %cst_89 = arith.constant 0.000000e+00 : f32
    %118 = vector.shape_cast %117 : vector<8x1xi1> to vector<8x1xi1>
    %119 = vector.broadcast %118 : vector<8x1xi1> to vector<8x128xi1>
    %120 = vector.broadcast %cst_89 : f32 to vector<8x128xf32>
    %121 = arith.select %119, %115, %120 : vector<8x128xi1>, vector<8x128xf32>
    %122 = arith.addf %78, %121 : vector<8x128xf32>
    %c2 = arith.constant 2 : index
    %c0_90 = arith.constant 0 : index
    %c0_91 = arith.constant 0 : index
    %123 = vector.load %arg11[%c2, %c0_90, %c0_91] : memref<3x128x128xbf16, #tpu.memory_space<vmem>>, vector<1x128x128xbf16>
    %124 = vector.shape_cast %123 : vector<1x128x128xbf16> to vector<128x128xbf16>
    %cst_92 = arith.constant dense<0.000000e+00> : vector<8x128xf32>
    %125 = tpu.matmul %32, %124, %cst_92 {dimension_numbers = #tpu.dot_dimension_numbers<[1], [0], [0], [1], [0, 0, 1, 1], [], []>} : vector<8x128xbf16>, vector<128x128xbf16>, vector<8x128xf32> -> vector<8x128xf32>
    %c2_93 = arith.constant 2 : index
    %c0_94 = arith.constant 0 : index
    %c0_95 = arith.constant 0 : index
    %126 = vector.load %arg15[%c2_93, %c0_94, %c0_95] : memref<3x1x128xf32, #tpu.memory_space<vmem>>, vector<1x1x128xf32>
    %127 = vector.shape_cast %126 : vector<1x1x128xf32> to vector<1x128xf32>
    %128 = vector.broadcast %127 : vector<1x128xf32> to vector<8x128xf32>
    %129 = arith.addf %125, %128 : vector<8x128xf32>
    %cst_96 = arith.constant 0.000000e+00 : f32
    %130 = vector.broadcast %cst_96 : f32 to vector<8x128xf32>
    %131 = arith.maximumf %129, %130 : vector<8x128xf32>
    %132 = arith.truncf %131 : vector<8x128xf32> to vector<8x128xbf16>
    %c2_97 = arith.constant 2 : index
    %c0_98 = arith.constant 0 : index
    %c0_99 = arith.constant 0 : index
    %133 = vector.load %arg12[%c2_97, %c0_98, %c0_99] : memref<3x128x128xbf16, #tpu.memory_space<vmem>>, vector<1x128x128xbf16>
    %134 = vector.shape_cast %133 : vector<1x128x128xbf16> to vector<128x128xbf16>
    %cst_100 = arith.constant dense<0.000000e+00> : vector<8x128xf32>
    %135 = tpu.matmul %132, %134, %cst_100 {dimension_numbers = #tpu.dot_dimension_numbers<[1], [0], [0], [1], [0, 0, 1, 1], [], []>} : vector<8x128xbf16>, vector<128x128xbf16>, vector<8x128xf32> -> vector<8x128xf32>
    %c2_101 = arith.constant 2 : index
    %c0_102 = arith.constant 0 : index
    %c0_103 = arith.constant 0 : index
    %136 = vector.load %arg16[%c2_101, %c0_102, %c0_103] : memref<3x1x128xf32, #tpu.memory_space<vmem>>, vector<1x1x128xf32>
    %137 = vector.shape_cast %136 : vector<1x1x128xf32> to vector<1x128xf32>
    %138 = vector.broadcast %137 : vector<1x128xf32> to vector<8x128xf32>
    %139 = arith.addf %135, %138 : vector<8x128xf32>
    %cst_104 = arith.constant 0.000000e+00 : f32
    %140 = vector.broadcast %cst_104 : f32 to vector<8x128xf32>
    %141 = arith.maximumf %139, %140 : vector<8x128xf32>
    %142 = arith.truncf %141 : vector<8x128xf32> to vector<8x128xbf16>
    %c2_105 = arith.constant 2 : index
    %c0_106 = arith.constant 0 : index
    %c0_107 = arith.constant 0 : index
    %143 = vector.load %arg13[%c2_105, %c0_106, %c0_107] : memref<3x128x128xbf16, #tpu.memory_space<vmem>>, vector<1x128x128xbf16>
    %144 = vector.shape_cast %143 : vector<1x128x128xbf16> to vector<128x128xbf16>
    %cst_108 = arith.constant dense<0.000000e+00> : vector<8x128xf32>
    %145 = tpu.matmul %142, %144, %cst_108 {dimension_numbers = #tpu.dot_dimension_numbers<[1], [0], [0], [1], [0, 0, 1, 1], [], []>} : vector<8x128xbf16>, vector<128x128xbf16>, vector<8x128xf32> -> vector<8x128xf32>
    %c2_109 = arith.constant 2 : index
    %c0_110 = arith.constant 0 : index
    %c0_111 = arith.constant 0 : index
    %146 = vector.load %arg17[%c2_109, %c0_110, %c0_111] : memref<3x1x128xf32, #tpu.memory_space<vmem>>, vector<1x1x128xf32>
    %147 = vector.shape_cast %146 : vector<1x1x128xf32> to vector<1x128xf32>
    %148 = vector.broadcast %147 : vector<1x128xf32> to vector<8x128xf32>
    %149 = arith.addf %145, %148 : vector<8x128xf32>
    %cst_112 = arith.constant 0.000000e+00 : f32
    %150 = vector.broadcast %cst_112 : f32 to vector<8x128xf32>
    %151 = arith.maximumf %149, %150 : vector<8x128xf32>
    %152 = arith.truncf %151 : vector<8x128xf32> to vector<8x128xbf16>
    %c2_113 = arith.constant 2 : index
    %c0_114 = arith.constant 0 : index
    %c0_115 = arith.constant 0 : index
    %153 = vector.load %arg14[%c2_113, %c0_114, %c0_115] : memref<3x128x128xbf16, #tpu.memory_space<vmem>>, vector<1x128x128xbf16>
    %154 = vector.shape_cast %153 : vector<1x128x128xbf16> to vector<128x128xbf16>
    %cst_116 = arith.constant dense<0.000000e+00> : vector<8x128xf32>
    %155 = tpu.matmul %152, %154, %cst_116 {dimension_numbers = #tpu.dot_dimension_numbers<[1], [0], [0], [1], [0, 0, 1, 1], [], []>} : vector<8x128xbf16>, vector<128x128xbf16>, vector<8x128xf32> -> vector<8x128xf32>
    %c2_117 = arith.constant 2 : index
    %c0_118 = arith.constant 0 : index
    %c0_119 = arith.constant 0 : index
    %156 = vector.load %arg18[%c2_117, %c0_118, %c0_119] : memref<3x1x128xf32, #tpu.memory_space<vmem>>, vector<1x1x128xf32>
    %157 = vector.shape_cast %156 : vector<1x1x128xf32> to vector<1x128xf32>
    %158 = vector.broadcast %157 : vector<1x128xf32> to vector<8x128xf32>
    %159 = arith.addf %155, %158 : vector<8x128xf32>
    %c2_i32 = arith.constant 2 : i32
    %160 = vector.broadcast %c2_i32 : i32 to vector<8x1xi32>
    %161 = arith.cmpi eq, %33, %160 : vector<8x1xi32>
    %cst_120 = arith.constant 0.000000e+00 : f32
    %162 = vector.shape_cast %161 : vector<8x1xi1> to vector<8x1xi1>
    %163 = vector.broadcast %162 : vector<8x1xi1> to vector<8x128xi1>
    %164 = vector.broadcast %cst_120 : f32 to vector<8x128xf32>
    %165 = arith.select %163, %159, %164 : vector<8x128xi1>, vector<8x128xf32>
    %166 = arith.addf %122, %165 : vector<8x128xf32>
    %c0_121 = arith.constant 0 : index
    %c0_122 = arith.constant 0 : index
    %167 = vector.load %arg19[%c0_121, %c0_122] : memref<8x128xf32, #tpu.memory_space<vmem>>, vector<8x128xf32>
    tpu.vector_store %arg19[%c0_121, %c0_122], %166 {strides = array<i32>} : memref<8x128xf32, #tpu.memory_space<vmem>>, vector<8x128xf32>,
    return
  }
  func.func @transform_0(%arg0: i32) -> (i32, i32) {
    %c0_i32 = arith.constant 0 : i32
    %c0_i32_0 = arith.constant 0 : i32
    return %arg0, %c0_i32 : i32, i32
  }
  func.func @transform_1(%arg0: i32) -> (i32, i32) {
    %c0_i32 = arith.constant 0 : i32
    %c0_i32_0 = arith.constant 0 : i32
    return %arg0, %c0_i32 : i32, i32
  }
  func.func @transform_2(%arg0: i32) -> (i32, i32) {
    %c0_i32 = arith.constant 0 : i32
    %c0_i32_0 = arith.constant 0 : i32
    %c0_i32_1 = arith.constant 0 : i32
    return %c0_i32, %c0_i32_0 : i32, i32
  }
  func.func @transform_3(%arg0: i32) -> (i32, i32) {
    %c0_i32 = arith.constant 0 : i32
    %c0_i32_0 = arith.constant 0 : i32
    %c0_i32_1 = arith.constant 0 : i32
    return %c0_i32, %c0_i32_0 : i32, i32
  }
  func.func @transform_4(%arg0: i32) -> (i32, i32) {
    %c0_i32 = arith.constant 0 : i32
    %c0_i32_0 = arith.constant 0 : i32
    %c0_i32_1 = arith.constant 0 : i32
    return %c0_i32, %c0_i32_0 : i32, i32
  }
  func.func @transform_5(%arg0: i32) -> (i32, i32) {
    %c0_i32 = arith.constant 0 : i32
    %c0_i32_0 = arith.constant 0 : i32
    %c0_i32_1 = arith.constant 0 : i32
    return %c0_i32, %c0_i32_0 : i32, i32
  }
  func.func @transform_6(%arg0: i32) -> (i32, i32) {
    %c0_i32 = arith.constant 0 : i32
    %c0_i32_0 = arith.constant 0 : i32
    %c0_i32_1 = arith.constant 0 : i32
    return %c0_i32, %c0_i32_0 : i32, i32
  }
  func.func @transform_7(%arg0: i32) -> (i32, i32) {
    %c0_i32 = arith.constant 0 : i32
    %c0_i32_0 = arith.constant 0 : i32
    %c0_i32_1 = arith.constant 0 : i32
    return %c0_i32, %c0_i32_0 : i32, i32
  }
  func.func @transform_8(%arg0: i32) -> (i32, i32) {
    %c0_i32 = arith.constant 0 : i32
    %c0_i32_0 = arith.constant 0 : i32
    %c0_i32_1 = arith.constant 0 : i32
    return %c0_i32, %c0_i32_0 : i32, i32
  }
  func.func @transform_9(%arg0: i32) -> (i32, i32) {
    %c0_i32 = arith.constant 0 : i32
    %c0_i32_0 = arith.constant 0 : i32
    %c0_i32_1 = arith.constant 0 : i32
    return %c0_i32, %c0_i32_0 : i32, i32
  }
  func.func @transform_10(%arg0: i32) -> (i32, i32, i32) {
    %c0_i32 = arith.constant 0 : i32
    %c0_i32_0 = arith.constant 0 : i32
    %c0_i32_1 = arith.constant 0 : i32
    %c0_i32_2 = arith.constant 0 : i32
    return %c0_i32, %c0_i32_0, %c0_i32_1 : i32, i32, i32
  }
  func.func @transform_11(%arg0: i32) -> (i32, i32, i32) {
    %c0_i32 = arith.constant 0 : i32
    %c0_i32_0 = arith.constant 0 : i32
    %c0_i32_1 = arith.constant 0 : i32
    %c0_i32_2 = arith.constant 0 : i32
    return %c0_i32, %c0_i32_0, %c0_i32_1 : i32, i32, i32
  }
  func.func @transform_12(%arg0: i32) -> (i32, i32, i32) {
    %c0_i32 = arith.constant 0 : i32
    %c0_i32_0 = arith.constant 0 : i32
    %c0_i32_1 = arith.constant 0 : i32
    %c0_i32_2 = arith.constant 0 : i32
    return %c0_i32, %c0_i32_0, %c0_i32_1 : i32, i32, i32
  }
  func.func @transform_13(%arg0: i32) -> (i32, i32, i32) {
    %c0_i32 = arith.constant 0 : i32
    %c0_i32_0 = arith.constant 0 : i32
    %c0_i32_1 = arith.constant 0 : i32
    %c0_i32_2 = arith.constant 0 : i32
    return %c0_i32, %c0_i32_0, %c0_i32_1 : i32, i32, i32
  }
  func.func @transform_14(%arg0: i32) -> (i32, i32, i32) {
    %c0_i32 = arith.constant 0 : i32
    %c0_i32_0 = arith.constant 0 : i32
    %c0_i32_1 = arith.constant 0 : i32
    %c0_i32_2 = arith.constant 0 : i32
    return %c0_i32, %c0_i32_0, %c0_i32_1 : i32, i32, i32
  }
  func.func @transform_15(%arg0: i32) -> (i32, i32, i32) {
    %c0_i32 = arith.constant 0 : i32
    %c0_i32_0 = arith.constant 0 : i32
    %c0_i32_1 = arith.constant 0 : i32
    %c0_i32_2 = arith.constant 0 : i32
    return %c0_i32, %c0_i32_0, %c0_i32_1 : i32, i32, i32
  }
  func.func @transform_16(%arg0: i32) -> (i32, i32, i32) {
    %c0_i32 = arith.constant 0 : i32
    %c0_i32_0 = arith.constant 0 : i32
    %c0_i32_1 = arith.constant 0 : i32
    %c0_i32_2 = arith.constant 0 : i32
    return %c0_i32, %c0_i32_0, %c0_i32_1 : i32, i32, i32
  }
  func.func @transform_17(%arg0: i32) -> (i32, i32, i32) {
    %c0_i32 = arith.constant 0 : i32
    %c0_i32_0 = arith.constant 0 : i32
    %c0_i32_1 = arith.constant 0 : i32
    %c0_i32_2 = arith.constant 0 : i32
    return %c0_i32, %c0_i32_0, %c0_i32_1 : i32, i32, i32
  }
  func.func @transform_18(%arg0: i32) -> (i32, i32) {
    %c0_i32 = arith.constant 0 : i32
    %c0_i32_0 = arith.constant 0 : i32
    return %arg0, %c0_i32 : i32, i32
  }
}

</mosaic_0001>

<llo_original>
// kernel: mapping_network_forward.1
$region0: #{mapping_network_forward.1}
  #allocation0 [shape = 'u32[]', space=smem, size = 0x4, offset = 0x4, fixed_abs, tag = 'smem constant byte address 0x4 - core index']
  #allocation1 [shape = 'u32[72,128]{1,0:T(1,128)}', space=vmem, size = 0x9000, scoped, tag = 'internal scratch']
  %s0 = inlined_call_operand.vmem [shape: bf16[16,128], index: 0, kind: input, shape index: {}]
  %s1 = inlined_call_operand.vmem [shape: s32[16,1], index: 1, kind: input, shape index: {}]
  %s2 = inlined_call_operand.vmem [shape: bf16[128,128], index: 2, kind: input, shape index: {}]
  %s3 = inlined_call_operand.vmem [shape: bf16[128,128], index: 3, kind: input, shape index: {}]
  %s4 = inlined_call_operand.vmem [shape: bf16[128,128], index: 4, kind: input, shape index: {}]
  %s5 = inlined_call_operand.vmem [shape: bf16[128,128], index: 5, kind: input, shape index: {}]
  %s6 = inlined_call_operand.vmem [shape: f32[1,128], index: 6, kind: input, shape index: {}]
  %s7 = inlined_call_operand.vmem [shape: f32[1,128], index: 7, kind: input, shape index: {}]
  %s8 = inlined_call_operand.vmem [shape: f32[1,128], index: 8, kind: input, shape index: {}]
  %s9 = inlined_call_operand.vmem [shape: f32[1,128], index: 9, kind: input, shape index: {}]
  %s10 = inlined_call_operand.vmem [shape: bf16[3,128,128], index: 10, kind: input, shape index: {}]
  %s11 = inlined_call_operand.vmem [shape: bf16[3,128,128], index: 11, kind: input, shape index: {}]
  %s12 = inlined_call_operand.vmem [shape: bf16[3,128,128], index: 12, kind: input, shape index: {}]
  %s13 = inlined_call_operand.vmem [shape: bf16[3,128,128], index: 13, kind: input, shape index: {}]
  %s14 = inlined_call_operand.vmem [shape: f32[3,1,128], index: 14, kind: input, shape index: {}]
  %s15 = inlined_call_operand.vmem [shape: f32[3,1,128], index: 15, kind: input, shape index: {}]
  %s16 = inlined_call_operand.vmem [shape: f32[3,1,128], index: 16, kind: input, shape index: {}]
  %s17 = inlined_call_operand.vmem [shape: f32[3,1,128], index: 17, kind: input, shape index: {}]
  %s18 = inlined_call_operand.hbm [shape: f32[16,128], index: 18, kind: output, shape index: {}]
  %s19 = sld [smem:[#allocation0]]
  $region105: #{mapping_network_forward.1} parent=0
    _
  %s21 = ssub.s32 1, %s19
  %s22 = scalar_select 0, %s21, %s19
  $region1: #{mapping_network_forward.1} parent=0
    #allocation2 [shape = 'u8[8192]{0}', space=vmem, size = 0x2000, scoped, tag = 'output window, operand 0']
    #allocation3 [shape = 's32[2]{0}', space=sflag, size = 0x8, scoped, tag = 'scoped memory for mapping_network_forward.1']
    %23 = vsyncpa [#allocation3], 0
    %s24 = scalar_lea.sflag [#allocation3], 1
    %25 = vsyncpa %s24, 0
    loop: start=0, step=1, limit=4
    $region2: #{mapping_network_forward.1} parent=1 // loop_pre_header
      _
    $region3: #{mapping_network_forward.1} parent=1 // loop_header
      %s27 = sphi 0, %s31
      %p28 = scmp.ge.s32.totalorder %s27, 4
      %s37 = sphi 0, %s39
      %s40 = sphi 0, %s37
      %s41 = sphi 0, %s40
      %s57 = sphi 0, %s41
      %s63 = sphi 0, %s65
      %s66 = sphi 0, %s63
      %s67 = sphi 0, %s66
      %s83 = sphi 0, %s67
      %s87 = sphi 0, %s87
      %s89 = sphi 0, %s87
      %s90 = sphi 0, %s89
      %s104 = sphi 0, %s90
      %s108 = sphi 0, %s108
      %s110 = sphi 0, %s108
      %s111 = sphi 0, %s110
      %s125 = sphi 0, %s111
      %s129 = sphi 0, %s129
      %s131 = sphi 0, %s129
      %s132 = sphi 0, %s131
      %s146 = sphi 0, %s132
      %s150 = sphi 0, %s150
      %s152 = sphi 0, %s150
      %s153 = sphi 0, %s152
      %s167 = sphi 0, %s153
      %s171 = sphi 0, %s171
      %s173 = sphi 0, %s171
      %s174 = sphi 0, %s173
      %s188 = sphi 0, %s174
      %s192 = sphi 0, %s192
      %s194 = sphi 0, %s192
      %s195 = sphi 0, %s194
      %s209 = sphi 0, %s195
      %s213 = sphi 0, %s213
      %s215 = sphi 0, %s213
      %s216 = sphi 0, %s215
      %s230 = sphi 0, %s216
      %s234 = sphi 0, %s234
      %s236 = sphi 0, %s234
      %s237 = sphi 0, %s236
      %s251 = sphi 0, %s237
      %s255 = sphi 0, %s255
      %s257 = sphi 0, %s255
      %s258 = sphi 0, %s257
      %s272 = sphi 0, %s258
      %s276 = sphi 0, %s276
      %s278 = sphi 0, %s276
      %s279 = sphi 0, %s278
      %s293 = sphi 0, %s279
      %s297 = sphi 0, %s297
      %s299 = sphi 0, %s297
      %s300 = sphi 0, %s299
      %s314 = sphi 0, %s300
      %s318 = sphi 0, %s318
      %s320 = sphi 0, %s318
      %s321 = sphi 0, %s320
      %s335 = sphi 0, %s321
      %s339 = sphi 0, %s339
      %s341 = sphi 0, %s339
      %s342 = sphi 0, %s341
      %s356 = sphi 0, %s342
      %s360 = sphi 0, %s360
      %s362 = sphi 0, %s360
      %s363 = sphi 0, %s362
      %s377 = sphi 0, %s363
      %s381 = sphi 0, %s381
      %s383 = sphi 0, %s381
      %s384 = sphi 0, %s383
      %s398 = sphi 0, %s384
      %s402 = sphi 0, %s402
      %s404 = sphi 0, %s402
      %s405 = sphi 0, %s404
      %s419 = sphi 0, %s405
      %s425 = sphi 0, %s427
      %s428 = sphi 0, %s425
      %s429 = sphi 0, %s428
      %s445 = sphi 0, %s429
    $region4: #{mapping_network_forward.1} parent=1 // loop_header_branch
      %30 = sbr.rel (%p28) target = $region8
    $region5: #{mapping_network_forward.1} parent=1 // loop_body
      %s32 = ssub.s32 %s27, 1
      %s33 = ssub.s32 %s27, 2
      %s34 = sadd.s32 %s27, 1
      %s35 = ssub.s32 %s27, %s34
      %p36 = scmp.eq.s32.totalorder %s35, 0
      %s38 = sadd.s32 %s37, 1
      %s39 = scalar_select %p36, %s37, %s38
      %p42 = pneg %p36
      %p43 = scmp.eq.s32.totalorder %s27, 1
      %p44 = por %p42, %p43
      %p45 = scmp.ne.s32.totalorder %s37, %s40
      %p46 = scmp.eq.s32.totalorder %s27, 0
      %p47 = por %p45, %p46
      %p48 = scmp.ne.s32.totalorder %s37, %s40
      %p49 = scmp.eq.s32.totalorder %s32, 1
      %p50 = por %p48, %p49
      %p51 = scmp.ne.s32.totalorder %s40, %s41
      %p52 = scmp.eq.s32.totalorder %s32, 0
      %p53 = por %p51, %p52
      %p54 = scmp.ne.s32.totalorder %s40, %s41
      %p55 = scmp.eq.s32.totalorder %s33, 1
      %p56 = por %p54, %p55
      %p58 = scmp.ne.s32.totalorder %s41, %s57
      %p59 = scmp.eq.s32.totalorder %s33, 0
      %p60 = por %p58, %p59
      %s61 = ssub.s32 %s27, %s34
      %p62 = scmp.eq.s32.totalorder %s61, 0
      %s64 = sadd.s32 %s63, 1
      %s65 = scalar_select %p62, %s63, %s64
      %p68 = pneg %p62
      %p69 = scmp.eq.s32.totalorder %s27, 1
      %p70 = por %p68, %p69
      %p71 = scmp.ne.s32.totalorder %s63, %s66
      %p72 = scmp.eq.s32.totalorder %s27, 0
      %p73 = por %p71, %p72
      %p74 = scmp.ne.s32.totalorder %s63, %s66
      %p75 = scmp.eq.s32.totalorder %s32, 1
      %p76 = por %p74, %p75
      %p77 = scmp.ne.s32.totalorder %s66, %s67
      %p78 = scmp.eq.s32.totalorder %s32, 0
      %p79 = por %p77, %p78
      %p80 = scmp.ne.s32.totalorder %s66, %s67
      %p81 = scmp.eq.s32.totalorder %s33, 1
      %p82 = por %p80, %p81
      %p84 = scmp.ne.s32.totalorder %s67, %s83
      %p85 = scmp.eq.s32.totalorder %s33, 0
      %p86 = por %p84, %p85
      %s88 = sadd.s32 %s87, 1
      %p91 = scmp.eq.s32.totalorder %s27, 1
      %p92 = scmp.ne.s32.totalorder %s87, %s89
      %p93 = scmp.eq.s32.totalorder %s27, 0
      %p94 = por %p92, %p93
      %p95 = scmp.ne.s32.totalorder %s87, %s89
      %p96 = scmp.eq.s32.totalorder %s32, 1
      %p97 = por %p95, %p96
      %p98 = scmp.ne.s32.totalorder %s89, %s90
      %p99 = scmp.eq.s32.totalorder %s32, 0
      %p100 = por %p98, %p99
      %p101 = scmp.ne.s32.totalorder %s89, %s90
      %p102 = scmp.eq.s32.totalorder %s33, 1
      %p103 = por %p101, %p102
      %p105 = scmp.ne.s32.totalorder %s90, %s104
      %p106 = scmp.eq.s32.totalorder %s33, 0
      %p107 = por %p105, %p106
      %s109 = sadd.s32 %s108, 1
      %p112 = scmp.eq.s32.totalorder %s27, 1
      %p113 = scmp.ne.s32.totalorder %s108, %s110
      %p114 = scmp.eq.s32.totalorder %s27, 0
      %p115 = por %p113, %p114
      %p116 = scmp.ne.s32.totalorder %s108, %s110
      %p117 = scmp.eq.s32.totalorder %s32, 1
      %p118 = por %p116, %p117
      %p119 = scmp.ne.s32.totalorder %s110, %s111
      %p120 = scmp.eq.s32.totalorder %s32, 0
      %p121 = por %p119, %p120
      %p122 = scmp.ne.s32.totalorder %s110, %s111
      %p123 = scmp.eq.s32.totalorder %s33, 1
      %p124 = por %p122, %p123
      %p126 = scmp.ne.s32.totalorder %s111, %s125
      %p127 = scmp.eq.s32.totalorder %s33, 0
      %p128 = por %p126, %p127
      %s130 = sadd.s32 %s129, 1
      %p133 = scmp.eq.s32.totalorder %s27, 1
      %p134 = scmp.ne.s32.totalorder %s129, %s131
      %p135 = scmp.eq.s32.totalorder %s27, 0
      %p136 = por %p134, %p135
      %p137 = scmp.ne.s32.totalorder %s129, %s131
      %p138 = scmp.eq.s32.totalorder %s32, 1
      %p139 = por %p137, %p138
      %p140 = scmp.ne.s32.totalorder %s131, %s132
      %p141 = scmp.eq.s32.totalorder %s32, 0
      %p142 = por %p140, %p141
      %p143 = scmp.ne.s32.totalorder %s131, %s132
      %p144 = scmp.eq.s32.totalorder %s33, 1
      %p145 = por %p143, %p144
      %p147 = scmp.ne.s32.totalorder %s132, %s146
      %p148 = scmp.eq.s32.totalorder %s33, 0
      %p149 = por %p147, %p148
      %s151 = sadd.s32 %s150, 1
      %p154 = scmp.eq.s32.totalorder %s27, 1
      %p155 = scmp.ne.s32.totalorder %s150, %s152
      %p156 = scmp.eq.s32.totalorder %s27, 0
      %p157 = por %p155, %p156
      %p158 = scmp.ne.s32.totalorder %s150, %s152
      %p159 = scmp.eq.s32.totalorder %s32, 1
      %p160 = por %p158, %p159
      %p161 = scmp.ne.s32.totalorder %s152, %s153
      %p162 = scmp.eq.s32.totalorder %s32, 0
      %p163 = por %p161, %p162
      %p164 = scmp.ne.s32.totalorder %s152, %s153
      %p165 = scmp.eq.s32.totalorder %s33, 1
      %p166 = por %p164, %p165
      %p168 = scmp.ne.s32.totalorder %s153, %s167
      %p169 = scmp.eq.s32.totalorder %s33, 0
      %p170 = por %p168, %p169
      %s172 = sadd.s32 %s171, 1
      %p175 = scmp.eq.s32.totalorder %s27, 1
      %p176 = scmp.ne.s32.totalorder %s171, %s173
      %p177 = scmp.eq.s32.totalorder %s27, 0
      %p178 = por %p176, %p177
      %p179 = scmp.ne.s32.totalorder %s171, %s173
      %p180 = scmp.eq.s32.totalorder %s32, 1
      %p181 = por %p179, %p180
      %p182 = scmp.ne.s32.totalorder %s173, %s174
      %p183 = scmp.eq.s32.totalorder %s32, 0
      %p184 = por %p182, %p183
      %p185 = scmp.ne.s32.totalorder %s173, %s174
      %p186 = scmp.eq.s32.totalorder %s33, 1
      %p187 = por %p185, %p186
      %p189 = scmp.ne.s32.totalorder %s174, %s188
      %p190 = scmp.eq.s32.totalorder %s33, 0
      %p191 = por %p189, %p190
      %s193 = sadd.s32 %s192, 1
      %p196 = scmp.eq.s32.totalorder %s27, 1
      %p197 = scmp.ne.s32.totalorder %s192, %s194
      %p198 = scmp.eq.s32.totalorder %s27, 0
      %p199 = por %p197, %p198
      %p200 = scmp.ne.s32.totalorder %s192, %s194
      %p201 = scmp.eq.s32.totalorder %s32, 1
      %p202 = por %p200, %p201
      %p203 = scmp.ne.s32.totalorder %s194, %s195
      %p204 = scmp.eq.s32.totalorder %s32, 0
      %p205 = por %p203, %p204
      %p206 = scmp.ne.s32.totalorder %s194, %s195
      %p207 = scmp.eq.s32.totalorder %s33, 1
      %p208 = por %p206, %p207
      %p210 = scmp.ne.s32.totalorder %s195, %s209
      %p211 = scmp.eq.s32.totalorder %s33, 0
      %p212 = por %p210, %p211
      %s214 = sadd.s32 %s213, 1
      %p217 = scmp.eq.s32.totalorder %s27, 1
      %p218 = scmp.ne.s32.totalorder %s213, %s215
      %p219 = scmp.eq.s32.totalorder %s27, 0
      %p220 = por %p218, %p219
      %p221 = scmp.ne.s32.totalorder %s213, %s215
      %p222 = scmp.eq.s32.totalorder %s32, 1
      %p223 = por %p221, %p222
      %p224 = scmp.ne.s32.totalorder %s215, %s216
      %p225 = scmp.eq.s32.totalorder %s32, 0
      %p226 = por %p224, %p225
      %p227 = scmp.ne.s32.totalorder %s215, %s216
      %p228 = scmp.eq.s32.totalorder %s33, 1
      %p229 = por %p227, %p228
      %p231 = scmp.ne.s32.totalorder %s216, %s230
      %p232 = scmp.eq.s32.totalorder %s33, 0
      %p233 = por %p231, %p232
      %s235 = sadd.s32 %s234, 1
      %p238 = scmp.eq.s32.totalorder %s27, 1
      %p239 = scmp.ne.s32.totalorder %s234, %s236
      %p240 = scmp.eq.s32.totalorder %s27, 0
      %p241 = por %p239, %p240
      %p242 = scmp.ne.s32.totalorder %s234, %s236
      %p243 = scmp.eq.s32.totalorder %s32, 1
      %p244 = por %p242, %p243
      %p245 = scmp.ne.s32.totalorder %s236, %s237
      %p246 = scmp.eq.s32.totalorder %s32, 0
      %p247 = por %p245, %p246
      %p248 = scmp.ne.s32.totalorder %s236, %s237
      %p249 = scmp.eq.s32.totalorder %s33, 1
      %p250 = por %p248, %p249
      %p252 = scmp.ne.s32.totalorder %s237, %s251
      %p253 = scmp.eq.s32.totalorder %s33, 0
      %p254 = por %p252, %p253
      %s256 = sadd.s32 %s255, 1
      %p259 = scmp.eq.s32.totalorder %s27, 1
      %p260 = scmp.ne.s32.totalorder %s255, %s257
      %p261 = scmp.eq.s32.totalorder %s27, 0
      %p262 = por %p260, %p261
      %p263 = scmp.ne.s32.totalorder %s255, %s257
      %p264 = scmp.eq.s32.totalorder %s32, 1
      %p265 = por %p263, %p264
      %p266 = scmp.ne.s32.totalorder %s257, %s258
      %p267 = scmp.eq.s32.totalorder %s32, 0
      %p268 = por %p266, %p267
      %p269 = scmp.ne.s32.totalorder %s257, %s258
      %p270 = scmp.eq.s32.totalorder %s33, 1
      %p271 = por %p269, %p270
      %p273 = scmp.ne.s32.totalorder %s258, %s272
      %p274 = scmp.eq.s32.totalorder %s33, 0
      %p275 = por %p273, %p274
      %s277 = sadd.s32 %s276, 1
      %p280 = scmp.eq.s32.totalorder %s27, 1
      %p281 = scmp.ne.s32.totalorder %s276, %s278
      %p282 = scmp.eq.s32.totalorder %s27, 0
      %p283 = por %p281, %p282
      %p284 = scmp.ne.s32.totalorder %s276, %s278
      %p285 = scmp.eq.s32.totalorder %s32, 1
      %p286 = por %p284, %p285
      %p287 = scmp.ne.s32.totalorder %s278, %s279
      %p288 = scmp.eq.s32.totalorder %s32, 0
      %p289 = por %p287, %p288
      %p290 = scmp.ne.s32.totalorder %s278, %s279
      %p291 = scmp.eq.s32.totalorder %s33, 1
      %p292 = por %p290, %p291
      %p294 = scmp.ne.s32.totalorder %s279, %s293
      %p295 = scmp.eq.s32.totalorder %s33, 0
      %p296 = por %p294, %p295
      %s298 = sadd.s32 %s297, 1
      %p301 = scmp.eq.s32.totalorder %s27, 1
      %p302 = scmp.ne.s32.totalorder %s297, %s299
      %p303 = scmp.eq.s32.totalorder %s27, 0
      %p304 = por %p302, %p303
      %p305 = scmp.ne.s32.totalorder %s297, %s299
      %p306 = scmp.eq.s32.totalorder %s32, 1
      %p307 = por %p305, %p306
      %p308 = scmp.ne.s32.totalorder %s299, %s300
      %p309 = scmp.eq.s32.totalorder %s32, 0
      %p310 = por %p308, %p309
      %p311 = scmp.ne.s32.totalorder %s299, %s300
      %p312 = scmp.eq.s32.totalorder %s33, 1
      %p313 = por %p311, %p312
      %p315 = scmp.ne.s32.totalorder %s300, %s314
      %p316 = scmp.eq.s32.totalorder %s33, 0
      %p317 = por %p315, %p316
      %s319 = sadd.s32 %s318, 1
      %p322 = scmp.eq.s32.totalorder %s27, 1
      %p323 = scmp.ne.s32.totalorder %s318, %s320
      %p324 = scmp.eq.s32.totalorder %s27, 0
      %p325 = por %p323, %p324
      %p326 = scmp.ne.s32.totalorder %s318, %s320
      %p327 = scmp.eq.s32.totalorder %s32, 1
      %p328 = por %p326, %p327
      %p329 = scmp.ne.s32.totalorder %s320, %s321
      %p330 = scmp.eq.s32.totalorder %s32, 0
      %p331 = por %p329, %p330
      %p332 = scmp.ne.s32.totalorder %s320, %s321
      %p333 = scmp.eq.s32.totalorder %s33, 1
      %p334 = por %p332, %p333
      %p336 = scmp.ne.s32.totalorder %s321, %s335
      %p337 = scmp.eq.s32.totalorder %s33, 0
      %p338 = por %p336, %p337
      %s340 = sadd.s32 %s339, 1
      %p343 = scmp.eq.s32.totalorder %s27, 1
      %p344 = scmp.ne.s32.totalorder %s339, %s341
      %p345 = scmp.eq.s32.totalorder %s27, 0
      %p346 = por %p344, %p345
      %p347 = scmp.ne.s32.totalorder %s339, %s341
      %p348 = scmp.eq.s32.totalorder %s32, 1
      %p349 = por %p347, %p348
      %p350 = scmp.ne.s32.totalorder %s341, %s342
      %p351 = scmp.eq.s32.totalorder %s32, 0
      %p352 = por %p350, %p351
      %p353 = scmp.ne.s32.totalorder %s341, %s342
      %p354 = scmp.eq.s32.totalorder %s33, 1
      %p355 = por %p353, %p354
      %p357 = scmp.ne.s32.totalorder %s342, %s356
      %p358 = scmp.eq.s32.totalorder %s33, 0
      %p359 = por %p357, %p358
      %s361 = sadd.s32 %s360, 1
      %p364 = scmp.eq.s32.totalorder %s27, 1
      %p365 = scmp.ne.s32.totalorder %s360, %s362
      %p366 = scmp.eq.s32.totalorder %s27, 0
      %p367 = por %p365, %p366
      %p368 = scmp.ne.s32.totalorder %s360, %s362
      %p369 = scmp.eq.s32.totalorder %s32, 1
      %p370 = por %p368, %p369
      %p371 = scmp.ne.s32.totalorder %s362, %s363
      %p372 = scmp.eq.s32.totalorder %s32, 0
      %p373 = por %p371, %p372
      %p374 = scmp.ne.s32.totalorder %s362, %s363
      %p375 = scmp.eq.s32.totalorder %s33, 1
      %p376 = por %p374, %p375
      %p378 = scmp.ne.s32.totalorder %s363, %s377
      %p379 = scmp.eq.s32.totalorder %s33, 0
      %p380 = por %p378, %p379
      %s382 = sadd.s32 %s381, 1
      %p385 = scmp.eq.s32.totalorder %s27, 1
      %p386 = scmp.ne.s32.totalorder %s381, %s383
      %p387 = scmp.eq.s32.totalorder %s27, 0
      %p388 = por %p386, %p387
      %p389 = scmp.ne.s32.totalorder %s381, %s383
      %p390 = scmp.eq.s32.totalorder %s32, 1
      %p391 = por %p389, %p390
      %p392 = scmp.ne.s32.totalorder %s383, %s384
      %p393 = scmp.eq.s32.totalorder %s32, 0
      %p394 = por %p392, %p393
      %p395 = scmp.ne.s32.totalorder %s383, %s384
      %p396 = scmp.eq.s32.totalorder %s33, 1
      %p397 = por %p395, %p396
      %p399 = scmp.ne.s32.totalorder %s384, %s398
      %p400 = scmp.eq.s32.totalorder %s33, 0
      %p401 = por %p399, %p400
      %s403 = sadd.s32 %s402, 1
      %p406 = scmp.eq.s32.totalorder %s27, 1
      %p407 = scmp.ne.s32.totalorder %s402, %s404
      %p408 = scmp.eq.s32.totalorder %s27, 0
      %p409 = por %p407, %p408
      %p410 = scmp.ne.s32.totalorder %s402, %s404
      %p411 = scmp.eq.s32.totalorder %s32, 1
      %p412 = por %p410, %p411
      %p413 = scmp.ne.s32.totalorder %s404, %s405
      %p414 = scmp.eq.s32.totalorder %s32, 0
      %p415 = por %p413, %p414
      %p416 = scmp.ne.s32.totalorder %s404, %s405
      %p417 = scmp.eq.s32.totalorder %s33, 1
      %p418 = por %p416, %p417
      %p420 = scmp.ne.s32.totalorder %s405, %s419
      %p421 = scmp.eq.s32.totalorder %s33, 0
      %p422 = por %p420, %p421
      %s423 = ssub.s32 %s27, %s34
      %p424 = scmp.eq.s32.totalorder %s423, 0
      %s426 = sadd.s32 %s425, 1
      %s427 = scalar_select %p424, %s425, %s426
      %p430 = pneg %p424
      %p431 = scmp.eq.s32.totalorder %s27, 1
      %p432 = por %p430, %p431
      %p433 = scmp.ne.s32.totalorder %s425, %s428
      %p434 = scmp.eq.s32.totalorder %s27, 0
      %p435 = por %p433, %p434
      %p436 = scmp.ne.s32.totalorder %s425, %s428
      %p437 = scmp.eq.s32.totalorder %s32, 1
      %p438 = por %p436, %p437
      %p439 = scmp.ne.s32.totalorder %s428, %s429
      %p440 = scmp.eq.s32.totalorder %s32, 0
      %p441 = por %p439, %p440
      %p442 = scmp.ne.s32.totalorder %s428, %s429
      %p443 = scmp.eq.s32.totalorder %s33, 1
      %p444 = por %p442, %p443
      %p446 = scmp.ne.s32.totalorder %s429, %s445
      %p447 = scmp.eq.s32.totalorder %s33, 0
      %p448 = por %p446, %p447
      %p449 = scmp.le.s32.totalorder 1, %s27
      %p450 = scmp.lt.s32.totalorder %s27, 3
      %p451 = pnand %p449, %p450
      %p452 = pneg %p451
      // Predicated region
      $region9: #{mapping_network_forward.1} parent=5 // pred_check
        _
      $region10: #{mapping_network_forward.1} parent=5 // pred_check_branch
        %454 = sbr.rel (%p451) target = $region12
      $region11: #{mapping_network_forward.1} parent=5 // pred_region
        %s455 = ssub.s32 %s27, 1
        // Predicated region
        $region13: #{mapping_network_forward.1} parent=11 // pred_check
          %p456 = pneg %p100
        $region14: #{mapping_network_forward.1} parent=11 // pred_check_branch
          %458 = sbr.rel (%p456) target = $region16
        $region15: #{mapping_network_forward.1} parent=11 // pred_region
          _
        $region16: #{mapping_network_forward.1} parent=11 // pred_fallthru
          _
        // Predicated region
        $region17: #{mapping_network_forward.1} parent=11 // pred_check
          %p459 = pneg %p121
        $region18: #{mapping_network_forward.1} parent=11 // pred_check_branch
          %461 = sbr.rel (%p459) target = $region20
        $region19: #{mapping_network_forward.1} parent=11 // pred_region
          _
        $region20: #{mapping_network_forward.1} parent=11 // pred_fallthru
          _
        // Predicated region
        $region21: #{mapping_network_forward.1} parent=11 // pred_check
          %p462 = pneg %p142
        $region22: #{mapping_network_forward.1} parent=11 // pred_check_branch
          %464 = sbr.rel (%p462) target = $region24
        $region23: #{mapping_network_forward.1} parent=11 // pred_region
          _
        $region24: #{mapping_network_forward.1} parent=11 // pred_fallthru
          _
        // Predicated region
        $region25: #{mapping_network_forward.1} parent=11 // pred_check
          %p465 = pneg %p163
        $region26: #{mapping_network_forward.1} parent=11 // pred_check_branch
          %467 = sbr.rel (%p465) target = $region28
        $region27: #{mapping_network_forward.1} parent=11 // pred_region
          _
        $region28: #{mapping_network_forward.1} parent=11 // pred_fallthru
          _
        // Predicated region
        $region29: #{mapping_network_forward.1} parent=11 // pred_check
          %p468 = pneg %p184
        $region30: #{mapping_network_forward.1} parent=11 // pred_check_branch
          %470 = sbr.rel (%p468) target = $region32
        $region31: #{mapping_network_forward.1} parent=11 // pred_region
          _
        $region32: #{mapping_network_forward.1} parent=11 // pred_fallthru
          _
        // Predicated region
        $region33: #{mapping_network_forward.1} parent=11 // pred_check
          %p471 = pneg %p205
        $region34: #{mapping_network_forward.1} parent=11 // pred_check_branch
          %473 = sbr.rel (%p471) target = $region36
        $region35: #{mapping_network_forward.1} parent=11 // pred_region
          _
        $region36: #{mapping_network_forward.1} parent=11 // pred_fallthru
          _
        // Predicated region
        $region37: #{mapping_network_forward.1} parent=11 // pred_check
          %p474 = pneg %p226
        $region38: #{mapping_network_forward.1} parent=11 // pred_check_branch
          %476 = sbr.rel (%p474) target = $region40
        $region39: #{mapping_network_forward.1} parent=11 // pred_region
          _
        $region40: #{mapping_network_forward.1} parent=11 // pred_fallthru
          _
        // Predicated region
        $region41: #{mapping_network_forward.1} parent=11 // pred_check
          %p477 = pneg %p247
        $region42: #{mapping_network_forward.1} parent=11 // pred_check_branch
          %479 = sbr.rel (%p477) target = $region44
        $region43: #{mapping_network_forward.1} parent=11 // pred_region
          _
        $region44: #{mapping_network_forward.1} parent=11 // pred_fallthru
          _
        // Predicated region
        $region45: #{mapping_network_forward.1} parent=11 // pred_check
          %p480 = pneg %p268
        $region46: #{mapping_network_forward.1} parent=11 // pred_check_branch
          %482 = sbr.rel (%p480) target = $region48
        $region47: #{mapping_network_forward.1} parent=11 // pred_region
          _
        $region48: #{mapping_network_forward.1} parent=11 // pred_fallthru
          _
        // Predicated region
        $region49: #{mapping_network_forward.1} parent=11 // pred_check
          %p483 = pneg %p289
        $region50: #{mapping_network_forward.1} parent=11 // pred_check_branch
          %485 = sbr.rel (%p483) target = $region52
        $region51: #{mapping_network_forward.1} parent=11 // pred_region
          _
        $region52: #{mapping_network_forward.1} parent=11 // pred_fallthru
          _
        // Predicated region
        $region53: #{mapping_network_forward.1} parent=11 // pred_check
          %p486 = pneg %p310
        $region54: #{mapping_network_forward.1} parent=11 // pred_check_branch
          %488 = sbr.rel (%p486) target = $region56
        $region55: #{mapping_network_forward.1} parent=11 // pred_region
          _
        $region56: #{mapping_network_forward.1} parent=11 // pred_fallthru
          _
        // Predicated region
        $region57: #{mapping_network_forward.1} parent=11 // pred_check
          %p489 = pneg %p331
        $region58: #{mapping_network_forward.1} parent=11 // pred_check_branch
          %491 = sbr.rel (%p489) target = $region60
        $region59: #{mapping_network_forward.1} parent=11 // pred_region
          _
        $region60: #{mapping_network_forward.1} parent=11 // pred_fallthru
          _
        // Predicated region
        $region61: #{mapping_network_forward.1} parent=11 // pred_check
          %p492 = pneg %p352
        $region62: #{mapping_network_forward.1} parent=11 // pred_check_branch
          %494 = sbr.rel (%p492) target = $region64
        $region63: #{mapping_network_forward.1} parent=11 // pred_region
          _
        $region64: #{mapping_network_forward.1} parent=11 // pred_fallthru
          _
        // Predicated region
        $region65: #{mapping_network_forward.1} parent=11 // pred_check
          %p495 = pneg %p373
        $region66: #{mapping_network_forward.1} parent=11 // pred_check_branch
          %497 = sbr.rel (%p495) target = $region68
        $region67: #{mapping_network_forward.1} parent=11 // pred_region
          _
        $region68: #{mapping_network_forward.1} parent=11 // pred_fallthru
          _
        // Predicated region
        $region69: #{mapping_network_forward.1} parent=11 // pred_check
          %p498 = pneg %p394
        $region70: #{mapping_network_forward.1} parent=11 // pred_check_branch
          %500 = sbr.rel (%p498) target = $region72
        $region71: #{mapping_network_forward.1} parent=11 // pred_region
          _
        $region72: #{mapping_network_forward.1} parent=11 // pred_fallthru
          _
        // Predicated region
        $region73: #{mapping_network_forward.1} parent=11 // pred_check
          %p501 = pneg %p415
        $region74: #{mapping_network_forward.1} parent=11 // pred_check_branch
          %503 = sbr.rel (%p501) target = $region76
        $region75: #{mapping_network_forward.1} parent=11 // pred_region
          _
        $region76: #{mapping_network_forward.1} parent=11 // pred_fallthru
          _
      $region12: #{mapping_network_forward.1} parent=5 // pred_fallthru
        _
      %p504 = scmp.lt.s32.totalorder %s27, 2
      // Predicated region
      $region77: #{mapping_network_forward.1} parent=5 // pred_check
        %p505 = pneg %p504
      $region78: #{mapping_network_forward.1} parent=5 // pred_check_branch
        %507 = sbr.rel (%p505) target = $region80
      $region79: #{mapping_network_forward.1} parent=5 // pred_region
        // Predicated region
        $region81: #{mapping_network_forward.1} parent=79 // pred_check
          %p508 = pneg %p47
        $region82: #{mapping_network_forward.1} parent=79 // pred_check_branch
          %510 = sbr.rel (%p508) target = $region84
        $region83: #{mapping_network_forward.1} parent=79 // pred_region
          %p511 = scmp.lt.s32.totalorder %s27, 1
          %s512 = scalar_select %p511, %s27, 1
          %s513 = smul.addr %s512, 4
          %s514 = scalar_lea.vmem %s0, %s513
        $region84: #{mapping_network_forward.1} parent=79 // pred_fallthru
          _
        // Predicated region
        $region85: #{mapping_network_forward.1} parent=79 // pred_check
          %p515 = pneg %p73
        $region86: #{mapping_network_forward.1} parent=79 // pred_check_branch
          %517 = sbr.rel (%p515) target = $region88
        $region87: #{mapping_network_forward.1} parent=79 // pred_region
          %p518 = scmp.lt.s32.totalorder %s27, 1
          %s519 = scalar_select %p518, %s27, 1
          %s520 = smul.addr %s519, 8
          %s521 = scalar_lea.vmem %s1, %s520
        $region88: #{mapping_network_forward.1} parent=79 // pred_fallthru
          _
      $region80: #{mapping_network_forward.1} parent=5 // pred_fallthru
        _
      %p522 = scmp.le.s32.totalorder 1, %s27
      %p523 = scmp.lt.s32.totalorder %s27, 3
      %p524 = pnand %p522, %p523
      %p525 = pneg %p524
      // Predicated region
      $region89: #{mapping_network_forward.1} parent=5 // pred_check
        _
      $region90: #{mapping_network_forward.1} parent=5 // pred_check_branch
        %527 = sbr.rel (%p524) target = $region92
      $region91: #{mapping_network_forward.1} parent=5 // pred_region
        %s528 = ssub.s32 %s27, 1
        %p529 = scmp.lt.s32.totalorder %s32, 1
        %s530 = scalar_select %p529, %s32, 1
        %s531 = smul.addr %s530, 4
        %s532 = scalar_lea.vmem %s0, %s531
        %p533 = pneg %p53
        %p534 = pneg %p50
        %p535 = scmp.lt.s32.totalorder %s32, 1
        %s536 = scalar_select %p535, %s32, 1
        %s537 = smul.addr %s536, 8
        %s538 = scalar_lea.vmem %s1, %s537
        %p539 = pneg %p79
        %p540 = pneg %p76
        %p541 = pneg %p100
        %p542 = pneg %p97
        %p543 = pneg %p121
        %p544 = pneg %p118
        %p545 = pneg %p142
        %p546 = pneg %p139
        %p547 = pneg %p163
        %p548 = pneg %p160
        %p549 = pneg %p184
        %p550 = pneg %p181
        %p551 = pneg %p205
        %p552 = pneg %p202
        %p553 = pneg %p226
        %p554 = pneg %p223
        %p555 = pneg %p247
        %p556 = pneg %p244
        %p557 = pneg %p268
        %p558 = pneg %p265
        %p559 = pneg %p289
        %p560 = pneg %p286
        %p561 = pneg %p310
        %p562 = pneg %p307
        %p563 = pneg %p331
        %p564 = pneg %p328
        %p565 = pneg %p352
        %p566 = pneg %p349
        %p567 = pneg %p373
        %p568 = pneg %p370
        %p569 = pneg %p394
        %p570 = pneg %p391
        %p571 = pneg %p415
        %p572 = pneg %p412
        %p573 = pneg %p441
        %p574 = pneg %p438
        %s575 = sand.u32 %s428, 1
        %s576 = scalar_lea.sflag [#allocation3], %s575
        %s577 = sand.u32 %s428, 1
        %s578 = smul.addr %s577, 8
        %s579 = scalar_lea.vmem [#allocation2], %s578
        %p580 = scmp.lt.s32.totalorder %s32, 1
        %s581 = scalar_select %p580, %s32, 1
        %s582 = smul.addr %s581, 4
        %s583 = scalar_lea.vmem %s0, %s582
        %p584 = scmp.lt.s32.totalorder %s32, 1
        %s585 = scalar_select %p584, %s32, 1
        %s586 = smul.addr %s585, 8
        %s587 = scalar_lea.vmem %s1, %s586
        %v588 = vld [vmem:[%s583] sm:$0xf]
        %v589 = vld [vmem:[%s2] sm:$0xf]
        %v590 = vld [vmem:[%s2 + $0x4] sm:$0xf]
        %v591 = vld [vmem:[%s2 + $0x8] sm:$0xf]
        %v592 = vld [vmem:[%s2 + $0xc] sm:$0xf]
        %v593 = vld [vmem:[%s2 + $0x10] sm:$0xf]
        %v594 = vld [vmem:[%s2 + $0x14] sm:$0xf]
        %v595 = vld [vmem:[%s2 + $0x18] sm:$0xf]
        %v596 = vld [vmem:[%s2 + $0x1c] sm:$0xf]
        %v597 = vld [vmem:[%s2 + $0x20] sm:$0xf]
        %v598 = vld [vmem:[%s2 + $0x24] sm:$0xf]
        %v599 = vld [vmem:[%s2 + $0x28] sm:$0xf]
        %v600 = vld [vmem:[%s2 + $0x2c] sm:$0xf]
        %v601 = vld [vmem:[%s2 + $0x30] sm:$0xf]
        %v602 = vld [vmem:[%s2 + $0x34] sm:$0xf]
        %v603 = vld [vmem:[%s2 + $0x38] sm:$0xf]
        %v604 = vld [vmem:[%s2 + $0x3c] sm:$0xf]
        %v605 = vld [vmem:[%s6] sm:$0x1]
        %v607 = vperm.slane %v605, 0
        %v625 = vunpack.c.l.b16 %v589
        %v626 = vunpack.c.l.b16 %v590
        %v627 = vunpack.c.l.b16 %v591
        %v628 = vunpack.c.l.b16 %v592
        %v629 = vunpack.c.l.b16 %v593
        %v630 = vunpack.c.l.b16 %v594
        %v631 = vunpack.c.l.b16 %v595
        %v632 = vunpack.c.l.b16 %v596
        %v633 = vunpack.c.l.b16 %v597
        %v634 = vunpack.c.l.b16 %v598
        %v635 = vunpack.c.l.b16 %v599
        %v636 = vunpack.c.l.b16 %v600
        %v637 = vunpack.c.l.b16 %v601
        %v638 = vunpack.c.l.b16 %v602
        %v639 = vunpack.c.l.b16 %v603
        %v640 = vunpack.c.l.b16 %v604
        %v641 = vpack.c.b16 %v626, %v625
        %v642 = vpack.c.b16 %v628, %v627
        %v643 = vpack.c.b16 %v630, %v629
        %v644 = vpack.c.b16 %v632, %v631
        %v645 = vpack.c.b16 %v634, %v633
        %v646 = vpack.c.b16 %v636, %v635
        %v647 = vpack.c.b16 %v638, %v637
        %v648 = vpack.c.b16 %v640, %v639
        %657 = vmatpush.bf16.msra.mxu0 %v648
        %658 = vmatpush.bf16.msra.mxu0 %v647
        %659 = vmatpush.bf16.msra.mxu0 %v646
        %660 = vmatpush.bf16.msra.mxu0 %v645
        %661 = vmatpush.bf16.msra.mxu0 %v644
        %662 = vmatpush.bf16.msra.mxu0 %v643
        %663 = vmatpush.bf16.msra.mxu0 %v642
        %664 = vmatpush.bf16.msra.mxu0 %v641
        %665 = vmatmul.bf16.gmra.mxu0 %v588
        %v666 = vpop.f32.mrf.mxu0
        %v667 = vadd.f32 %v607, %v666
        %v668 = vpop.f32.mrf.mxu0
        %669 = vdwg.mxu0
        %v670 = vmax.f32 %v667, 0.0
        %v671 = vpack.c.bf16 %v670, %v670
        %v672 = vld [vmem:[%s3] sm:$0xf]
        %v673 = vld [vmem:[%s3 + $0x4] sm:$0xf]
        %v674 = vld [vmem:[%s3 + $0x8] sm:$0xf]
        %v675 = vld [vmem:[%s3 + $0xc] sm:$0xf]
        %v676 = vld [vmem:[%s3 + $0x10] sm:$0xf]
        %v677 = vld [vmem:[%s3 + $0x14] sm:$0xf]
        %v678 = vld [vmem:[%s3 + $0x18] sm:$0xf]
        %v679 = vld [vmem:[%s3 + $0x1c] sm:$0xf]
        %v680 = vld [vmem:[%s3 + $0x20] sm:$0xf]
        %v681 = vld [vmem:[%s3 + $0x24] sm:$0xf]
        %v682 = vld [vmem:[%s3 + $0x28] sm:$0xf]
        %v683 = vld [vmem:[%s3 + $0x2c] sm:$0xf]
        %v684 = vld [vmem:[%s3 + $0x30] sm:$0xf]
        %v685 = vld [vmem:[%s3 + $0x34] sm:$0xf]
        %v686 = vld [vmem:[%s3 + $0x38] sm:$0xf]
        %v687 = vld [vmem:[%s3 + $0x3c] sm:$0xf]
        %v688 = vld [vmem:[%s7] sm:$0x1]
        %v690 = vperm.slane %v688, 0
        %v708 = vunpack.c.l.b16 %v672
        %v709 = vunpack.c.l.b16 %v673
        %v710 = vunpack.c.l.b16 %v674
        %v711 = vunpack.c.l.b16 %v675
        %v712 = vunpack.c.l.b16 %v676
        %v713 = vunpack.c.l.b16 %v677
        %v714 = vunpack.c.l.b16 %v678
        %v715 = vunpack.c.l.b16 %v679
        %v716 = vunpack.c.l.b16 %v680
        %v717 = vunpack.c.l.b16 %v681
        %v718 = vunpack.c.l.b16 %v682
        %v719 = vunpack.c.l.b16 %v683
        %v720 = vunpack.c.l.b16 %v684
        %v721 = vunpack.c.l.b16 %v685
        %v722 = vunpack.c.l.b16 %v686
        %v723 = vunpack.c.l.b16 %v687
        %v724 = vpack.c.b16 %v709, %v708
        %v725 = vpack.c.b16 %v711, %v710
        %v726 = vpack.c.b16 %v713, %v712
        %v727 = vpack.c.b16 %v715, %v714
        %v728 = vpack.c.b16 %v717, %v716
        %v729 = vpack.c.b16 %v719, %v718
        %v730 = vpack.c.b16 %v721, %v720
        %v731 = vpack.c.b16 %v723, %v722
        %740 = vmatpush.bf16.msra.mxu0 %v731
        %741 = vmatpush.bf16.msra.mxu0 %v730
        %742 = vmatpush.bf16.msra.mxu0 %v729
        %743 = vmatpush.bf16.msra.mxu0 %v728
        %744 = vmatpush.bf16.msra.mxu0 %v727
        %745 = vmatpush.bf16.msra.mxu0 %v726
        %746 = vmatpush.bf16.msra.mxu0 %v725
        %747 = vmatpush.bf16.msra.mxu0 %v724
        %748 = vmatmul.bf16.gmra.mxu0 %v671
        %v749 = vpop.f32.mrf.mxu0
        %v750 = vadd.f32 %v690, %v749
        %v751 = vpop.f32.mrf.mxu0
        %752 = vdwg.mxu0
        %v753 = vmax.f32 %v750, 0.0
        %v754 = vpack.c.bf16 %v753, %v753
        %v755 = vld [vmem:[%s4] sm:$0xf]
        %v756 = vld [vmem:[%s4 + $0x4] sm:$0xf]
        %v757 = vld [vmem:[%s4 + $0x8] sm:$0xf]
        %v758 = vld [vmem:[%s4 + $0xc] sm:$0xf]
        %v759 = vld [vmem:[%s4 + $0x10] sm:$0xf]
        %v760 = vld [vmem:[%s4 + $0x14] sm:$0xf]
        %v761 = vld [vmem:[%s4 + $0x18] sm:$0xf]
        %v762 = vld [vmem:[%s4 + $0x1c] sm:$0xf]
        %v763 = vld [vmem:[%s4 + $0x20] sm:$0xf]
        %v764 = vld [vmem:[%s4 + $0x24] sm:$0xf]
        %v765 = vld [vmem:[%s4 + $0x28] sm:$0xf]
        %v766 = vld [vmem:[%s4 + $0x2c] sm:$0xf]
        %v767 = vld [vmem:[%s4 + $0x30] sm:$0xf]
        %v768 = vld [vmem:[%s4 + $0x34] sm:$0xf]
        %v769 = vld [vmem:[%s4 + $0x38] sm:$0xf]
        %v770 = vld [vmem:[%s4 + $0x3c] sm:$0xf]
        %v771 = vld [vmem:[%s8] sm:$0x1]
        %v773 = vperm.slane %v771, 0
        %v791 = vunpack.c.l.b16 %v755
        %v792 = vunpack.c.l.b16 %v756
        %v793 = vunpack.c.l.b16 %v757
        %v794 = vunpack.c.l.b16 %v758
        %v795 = vunpack.c.l.b16 %v759
        %v796 = vunpack.c.l.b16 %v760
        %v797 = vunpack.c.l.b16 %v761
        %v798 = vunpack.c.l.b16 %v762
        %v799 = vunpack.c.l.b16 %v763
        %v800 = vunpack.c.l.b16 %v764
        %v801 = vunpack.c.l.b16 %v765
        %v802 = vunpack.c.l.b16 %v766
        %v803 = vunpack.c.l.b16 %v767
        %v804 = vunpack.c.l.b16 %v768
        %v805 = vunpack.c.l.b16 %v769
        %v806 = vunpack.c.l.b16 %v770
        %v807 = vpack.c.b16 %v792, %v791
        %v808 = vpack.c.b16 %v794, %v793
        %v809 = vpack.c.b16 %v796, %v795
        %v810 = vpack.c.b16 %v798, %v797
        %v811 = vpack.c.b16 %v800, %v799
        %v812 = vpack.c.b16 %v802, %v801
        %v813 = vpack.c.b16 %v804, %v803
        %v814 = vpack.c.b16 %v806, %v805
        %823 = vmatpush.bf16.msra.mxu0 %v814
        %824 = vmatpush.bf16.msra.mxu0 %v813
        %825 = vmatpush.bf16.msra.mxu0 %v812
        %826 = vmatpush.bf16.msra.mxu0 %v811
        %827 = vmatpush.bf16.msra.mxu0 %v810
        %828 = vmatpush.bf16.msra.mxu0 %v809
        %829 = vmatpush.bf16.msra.mxu0 %v808
        %830 = vmatpush.bf16.msra.mxu0 %v807
        %831 = vmatmul.bf16.gmra.mxu0 %v754
        %v832 = vpop.f32.mrf.mxu0
        %v833 = vadd.f32 %v773, %v832
        %v834 = vpop.f32.mrf.mxu0
        %835 = vdwg.mxu0
        %v836 = vmax.f32 %v833, 0.0
        %v837 = vpack.c.bf16 %v836, %v836
        %v838 = vld [vmem:[%s5] sm:$0xf]
        %v839 = vld [vmem:[%s5 + $0x4] sm:$0xf]
        %v840 = vld [vmem:[%s5 + $0x8] sm:$0xf]
        %v841 = vld [vmem:[%s5 + $0xc] sm:$0xf]
        %v842 = vld [vmem:[%s5 + $0x10] sm:$0xf]
        %v843 = vld [vmem:[%s5 + $0x14] sm:$0xf]
        %v844 = vld [vmem:[%s5 + $0x18] sm:$0xf]
        %v845 = vld [vmem:[%s5 + $0x1c] sm:$0xf]
        %v846 = vld [vmem:[%s5 + $0x20] sm:$0xf]
        %v847 = vld [vmem:[%s5 + $0x24] sm:$0xf]
        %v848 = vld [vmem:[%s5 + $0x28] sm:$0xf]
        %v849 = vld [vmem:[%s5 + $0x2c] sm:$0xf]
        %v850 = vld [vmem:[%s5 + $0x30] sm:$0xf]
        %v851 = vld [vmem:[%s5 + $0x34] sm:$0xf]
        %v852 = vld [vmem:[%s5 + $0x38] sm:$0xf]
        %v853 = vld [vmem:[%s5 + $0x3c] sm:$0xf]
        %v854 = vld [vmem:[%s9] sm:$0x1]
        %v856 = vperm.slane %v854, 0
        %v874 = vunpack.c.l.b16 %v838
        %v875 = vunpack.c.l.b16 %v839
        %v876 = vunpack.c.l.b16 %v840
        %v877 = vunpack.c.l.b16 %v841
        %v878 = vunpack.c.l.b16 %v842
        %v879 = vunpack.c.l.b16 %v843
        %v880 = vunpack.c.l.b16 %v844
        %v881 = vunpack.c.l.b16 %v845
        %v882 = vunpack.c.l.b16 %v846
        %v883 = vunpack.c.l.b16 %v847
        %v884 = vunpack.c.l.b16 %v848
        %v885 = vunpack.c.l.b16 %v849
        %v886 = vunpack.c.l.b16 %v850
        %v887 = vunpack.c.l.b16 %v851
        %v888 = vunpack.c.l.b16 %v852
        %v889 = vunpack.c.l.b16 %v853
        %v890 = vpack.c.b16 %v875, %v874
        %v891 = vpack.c.b16 %v877, %v876
        %v892 = vpack.c.b16 %v879, %v878
        %v893 = vpack.c.b16 %v881, %v880
        %v894 = vpack.c.b16 %v883, %v882
        %v895 = vpack.c.b16 %v885, %v884
        %v896 = vpack.c.b16 %v887, %v886
        %v897 = vpack.c.b16 %v889, %v888
        %906 = vmatpush.bf16.msra.mxu0 %v897
        %907 = vmatpush.bf16.msra.mxu0 %v896
        %908 = vmatpush.bf16.msra.mxu0 %v895
        %909 = vmatpush.bf16.msra.mxu0 %v894
        %910 = vmatpush.bf16.msra.mxu0 %v893
        %911 = vmatpush.bf16.msra.mxu0 %v892
        %912 = vmatpush.bf16.msra.mxu0 %v891
        %913 = vmatpush.bf16.msra.mxu0 %v890
        %914 = vmatmul.bf16.gmra.mxu0 %v837
        %v915 = vpop.f32.mrf.mxu0
        %v916 = vadd.f32 %v856, %v915
        %v917 = vpop.f32.mrf.mxu0
        %918 = vdwg.mxu0
        %v919 = vmax.f32 %v916, 0.0
        %v920 = vpack.c.bf16 %v919, %v919
        %v921 = vld [vmem:[%s587] sm:$0xff]
        %v922 = vld [vmem:[%s10] sm:$0xf]
        %v923 = vld [vmem:[%s10 + $0x4] sm:$0xf]
        %v924 = vld [vmem:[%s10 + $0x8] sm:$0xf]
        %v925 = vld [vmem:[%s10 + $0xc] sm:$0xf]
        %v926 = vld [vmem:[%s10 + $0x10] sm:$0xf]
        %v927 = vld [vmem:[%s10 + $0x14] sm:$0xf]
        %v928 = vld [vmem:[%s10 + $0x18] sm:$0xf]
        %v929 = vld [vmem:[%s10 + $0x1c] sm:$0xf]
        %v930 = vld [vmem:[%s10 + $0x20] sm:$0xf]
        %v931 = vld [vmem:[%s10 + $0x24] sm:$0xf]
        %v932 = vld [vmem:[%s10 + $0x28] sm:$0xf]
        %v933 = vld [vmem:[%s10 + $0x2c] sm:$0xf]
        %v934 = vld [vmem:[%s10 + $0x30] sm:$0xf]
        %v935 = vld [vmem:[%s10 + $0x34] sm:$0xf]
        %v936 = vld [vmem:[%s10 + $0x38] sm:$0xf]
        %v937 = vld [vmem:[%s10 + $0x3c] sm:$0xf]
        %v938 = vld [vmem:[%s14] sm:$0x1]
        %v940 = vperm.slane %v938, 0
        %v958 = vunpack.c.l.b16 %v922
        %v959 = vunpack.c.l.b16 %v923
        %v960 = vunpack.c.l.b16 %v924
        %v961 = vunpack.c.l.b16 %v925
        %v962 = vunpack.c.l.b16 %v926
        %v963 = vunpack.c.l.b16 %v927
        %v964 = vunpack.c.l.b16 %v928
        %v965 = vunpack.c.l.b16 %v929
        %v966 = vunpack.c.l.b16 %v930
        %v967 = vunpack.c.l.b16 %v931
        %v968 = vunpack.c.l.b16 %v932
        %v969 = vunpack.c.l.b16 %v933
        %v970 = vunpack.c.l.b16 %v934
        %v971 = vunpack.c.l.b16 %v935
        %v972 = vunpack.c.l.b16 %v936
        %v973 = vunpack.c.l.b16 %v937
        %v974 = vpack.c.b16 %v959, %v958
        %v975 = vpack.c.b16 %v961, %v960
        %v976 = vpack.c.b16 %v963, %v962
        %v977 = vpack.c.b16 %v965, %v964
        %v978 = vpack.c.b16 %v967, %v966
        %v979 = vpack.c.b16 %v969, %v968
        %v980 = vpack.c.b16 %v971, %v970
        %v981 = vpack.c.b16 %v973, %v972
        %990 = vmatpush.bf16.msra.mxu0 %v981
        %991 = vmatpush.bf16.msra.mxu0 %v980
        %992 = vmatpush.bf16.msra.mxu0 %v979
        %993 = vmatpush.bf16.msra.mxu0 %v978
        %994 = vmatpush.bf16.msra.mxu0 %v977
        %995 = vmatpush.bf16.msra.mxu0 %v976
        %996 = vmatpush.bf16.msra.mxu0 %v975
        %997 = vmatpush.bf16.msra.mxu0 %v974
        %998 = vmatmul.bf16.gmra.mxu0 %v920
        %v999 = vpop.f32.mrf.mxu0
        %v1000 = vadd.f32 %v940, %v999
        %v1001 = vpop.f32.mrf.mxu0
        %1002 = vdwg.mxu0
        %v1003 = vmax.f32 %v1000, 0.0
        %v1004 = vpack.c.bf16 %v1003, %v1003
        %v1005 = vld [vmem:[%s11] sm:$0xf]
        %v1006 = vld [vmem:[%s11 + $0x4] sm:$0xf]
        %v1007 = vld [vmem:[%s11 + $0x8] sm:$0xf]
        %v1008 = vld [vmem:[%s11 + $0xc] sm:$0xf]
        %v1009 = vld [vmem:[%s11 + $0x10] sm:$0xf]
        %v1010 = vld [vmem:[%s11 + $0x14] sm:$0xf]
        %v1011 = vld [vmem:[%s11 + $0x18] sm:$0xf]
        %v1012 = vld [vmem:[%s11 + $0x1c] sm:$0xf]
        %v1013 = vld [vmem:[%s11 + $0x20] sm:$0xf]
        %v1014 = vld [vmem:[%s11 + $0x24] sm:$0xf]
        %v1015 = vld [vmem:[%s11 + $0x28] sm:$0xf]
        %v1016 = vld [vmem:[%s11 + $0x2c] sm:$0xf]
        %v1017 = vld [vmem:[%s11 + $0x30] sm:$0xf]
        %v1018 = vld [vmem:[%s11 + $0x34] sm:$0xf]
        %v1019 = vld [vmem:[%s11 + $0x38] sm:$0xf]
        %v1020 = vld [vmem:[%s11 + $0x3c] sm:$0xf]
        %v1021 = vld [vmem:[%s15] sm:$0x1]
        %v1023 = vperm.slane %v1021, 0
        %v1041 = vunpack.c.l.b16 %v1005
        %v1042 = vunpack.c.l.b16 %v1006
        %v1043 = vunpack.c.l.b16 %v1007
        %v1044 = vunpack.c.l.b16 %v1008
        %v1045 = vunpack.c.l.b16 %v1009
        %v1046 = vunpack.c.l.b16 %v1010
        %v1047 = vunpack.c.l.b16 %v1011
        %v1048 = vunpack.c.l.b16 %v1012
        %v1049 = vunpack.c.l.b16 %v1013
        %v1050 = vunpack.c.l.b16 %v1014
        %v1051 = vunpack.c.l.b16 %v1015
        %v1052 = vunpack.c.l.b16 %v1016
        %v1053 = vunpack.c.l.b16 %v1017
        %v1054 = vunpack.c.l.b16 %v1018
        %v1055 = vunpack.c.l.b16 %v1019
        %v1056 = vunpack.c.l.b16 %v1020
        %v1057 = vpack.c.b16 %v1042, %v1041
        %v1058 = vpack.c.b16 %v1044, %v1043
        %v1059 = vpack.c.b16 %v1046, %v1045
        %v1060 = vpack.c.b16 %v1048, %v1047
        %v1061 = vpack.c.b16 %v1050, %v1049
        %v1062 = vpack.c.b16 %v1052, %v1051
        %v1063 = vpack.c.b16 %v1054, %v1053
        %v1064 = vpack.c.b16 %v1056, %v1055
        %1073 = vmatpush.bf16.msra.mxu0 %v1064
        %1074 = vmatpush.bf16.msra.mxu0 %v1063
        %1075 = vmatpush.bf16.msra.mxu0 %v1062
        %1076 = vmatpush.bf16.msra.mxu0 %v1061
        %1077 = vmatpush.bf16.msra.mxu0 %v1060
        %1078 = vmatpush.bf16.msra.mxu0 %v1059
        %1079 = vmatpush.bf16.msra.mxu0 %v1058
        %1080 = vmatpush.bf16.msra.mxu0 %v1057
        %1081 = vmatmul.bf16.gmra.mxu0 %v1004
        %v1082 = vpop.f32.mrf.mxu0
        %v1083 = vadd.f32 %v1023, %v1082
        %v1084 = vpop.f32.mrf.mxu0
        %1085 = vdwg.mxu0
        %v1086 = vmax.f32 %v1083, 0.0
        %v1087 = vpack.c.bf16 %v1086, %v1086
        %v1088 = vld [vmem:[%s12] sm:$0xf]
        %v1089 = vld [vmem:[%s12 + $0x4] sm:$0xf]
        %v1090 = vld [vmem:[%s12 + $0x8] sm:$0xf]
        %v1091 = vld [vmem:[%s12 + $0xc] sm:$0xf]
        %v1092 = vld [vmem:[%s12 + $0x10] sm:$0xf]
        %v1093 = vld [vmem:[%s12 + $0x14] sm:$0xf]
        %v1094 = vld [vmem:[%s12 + $0x18] sm:$0xf]
        %v1095 = vld [vmem:[%s12 + $0x1c] sm:$0xf]
        %v1096 = vld [vmem:[%s12 + $0x20] sm:$0xf]
        %v1097 = vld [vmem:[%s12 + $0x24] sm:$0xf]
        %v1098 = vld [vmem:[%s12 + $0x28] sm:$0xf]
        %v1099 = vld [vmem:[%s12 + $0x2c] sm:$0xf]
        %v1100 = vld [vmem:[%s12 + $0x30] sm:$0xf]
        %v1101 = vld [vmem:[%s12 + $0x34] sm:$0xf]
        %v1102 = vld [vmem:[%s12 + $0x38] sm:$0xf]
        %v1103 = vld [vmem:[%s12 + $0x3c] sm:$0xf]
        %v1104 = vld [vmem:[%s16] sm:$0x1]
        %v1106 = vperm.slane %v1104, 0
        %v1124 = vunpack.c.l.b16 %v1088
        %v1125 = vunpack.c.l.b16 %v1089
        %v1126 = vunpack.c.l.b16 %v1090
        %v1127 = vunpack.c.l.b16 %v1091
        %v1128 = vunpack.c.l.b16 %v1092
        %v1129 = vunpack.c.l.b16 %v1093
        %v1130 = vunpack.c.l.b16 %v1094
        %v1131 = vunpack.c.l.b16 %v1095
        %v1132 = vunpack.c.l.b16 %v1096
        %v1133 = vunpack.c.l.b16 %v1097
        %v1134 = vunpack.c.l.b16 %v1098
        %v1135 = vunpack.c.l.b16 %v1099
        %v1136 = vunpack.c.l.b16 %v1100
        %v1137 = vunpack.c.l.b16 %v1101
        %v1138 = vunpack.c.l.b16 %v1102
        %v1139 = vunpack.c.l.b16 %v1103
        %v1140 = vpack.c.b16 %v1125, %v1124
        %v1141 = vpack.c.b16 %v1127, %v1126
        %v1142 = vpack.c.b16 %v1129, %v1128
        %v1143 = vpack.c.b16 %v1131, %v1130
        %v1144 = vpack.c.b16 %v1133, %v1132
        %v1145 = vpack.c.b16 %v1135, %v1134
        %v1146 = vpack.c.b16 %v1137, %v1136
        %v1147 = vpack.c.b16 %v1139, %v1138
        %1156 = vmatpush.bf16.msra.mxu0 %v1147
        %1157 = vmatpush.bf16.msra.mxu0 %v1146
        %1158 = vmatpush.bf16.msra.mxu0 %v1145
        %1159 = vmatpush.bf16.msra.mxu0 %v1144
        %1160 = vmatpush.bf16.msra.mxu0 %v1143
        %1161 = vmatpush.bf16.msra.mxu0 %v1142
        %1162 = vmatpush.bf16.msra.mxu0 %v1141
        %1163 = vmatpush.bf16.msra.mxu0 %v1140
        %1164 = vmatmul.bf16.gmra.mxu0 %v1087
        %v1165 = vpop.f32.mrf.mxu0
        %v1166 = vadd.f32 %v1106, %v1165
        %v1167 = vpop.f32.mrf.mxu0
        %1168 = vdwg.mxu0
        %v1169 = vmax.f32 %v1166, 0.0
        %v1170 = vpack.c.bf16 %v1169, %v1169
        %v1171 = vld [vmem:[%s13] sm:$0xf]
        %v1172 = vld [vmem:[%s13 + $0x4] sm:$0xf]
        %v1173 = vld [vmem:[%s13 + $0x8] sm:$0xf]
        %v1174 = vld [vmem:[%s13 + $0xc] sm:$0xf]
        %v1175 = vld [vmem:[%s13 + $0x10] sm:$0xf]
        %v1176 = vld [vmem:[%s13 + $0x14] sm:$0xf]
        %v1177 = vld [vmem:[%s13 + $0x18] sm:$0xf]
        %v1178 = vld [vmem:[%s13 + $0x1c] sm:$0xf]
        %v1179 = vld [vmem:[%s13 + $0x20] sm:$0xf]
        %v1180 = vld [vmem:[%s13 + $0x24] sm:$0xf]
        %v1181 = vld [vmem:[%s13 + $0x28] sm:$0xf]
        %v1182 = vld [vmem:[%s13 + $0x2c] sm:$0xf]
        %v1183 = vld [vmem:[%s13 + $0x30] sm:$0xf]
        %v1184 = vld [vmem:[%s13 + $0x34] sm:$0xf]
        %v1185 = vld [vmem:[%s13 + $0x38] sm:$0xf]
        %v1186 = vld [vmem:[%s13 + $0x3c] sm:$0xf]
        %v1187 = vld [vmem:[%s17] sm:$0x1]
        %v1189 = vperm.slane %v1187, 0
        %v1207 = vunpack.c.l.b16 %v1171
        %v1208 = vunpack.c.l.b16 %v1172
        %v1209 = vunpack.c.l.b16 %v1173
        %v1210 = vunpack.c.l.b16 %v1174
        %v1211 = vunpack.c.l.b16 %v1175
        %v1212 = vunpack.c.l.b16 %v1176
        %v1213 = vunpack.c.l.b16 %v1177
        %v1214 = vunpack.c.l.b16 %v1178
        %v1215 = vunpack.c.l.b16 %v1179
        %v1216 = vunpack.c.l.b16 %v1180
        %v1217 = vunpack.c.l.b16 %v1181
        %v1218 = vunpack.c.l.b16 %v1182
        %v1219 = vunpack.c.l.b16 %v1183
        %v1220 = vunpack.c.l.b16 %v1184
        %v1221 = vunpack.c.l.b16 %v1185
        %v1222 = vunpack.c.l.b16 %v1186
        %v1223 = vpack.c.b16 %v1208, %v1207
        %v1224 = vpack.c.b16 %v1210, %v1209
        %v1225 = vpack.c.b16 %v1212, %v1211
        %v1226 = vpack.c.b16 %v1214, %v1213
        %v1227 = vpack.c.b16 %v1216, %v1215
        %v1228 = vpack.c.b16 %v1218, %v1217
        %v1229 = vpack.c.b16 %v1220, %v1219
        %v1230 = vpack.c.b16 %v1222, %v1221
        %1239 = vmatpush.bf16.msra.mxu0 %v1230
        %1240 = vmatpush.bf16.msra.mxu0 %v1229
        %1241 = vmatpush.bf16.msra.mxu0 %v1228
        %1242 = vmatpush.bf16.msra.mxu0 %v1227
        %1243 = vmatpush.bf16.msra.mxu0 %v1226
        %1244 = vmatpush.bf16.msra.mxu0 %v1225
        %1245 = vmatpush.bf16.msra.mxu0 %v1224
        %1246 = vmatpush.bf16.msra.mxu0 %v1223
        %1247 = vmatmul.bf16.gmra.mxu0 %v1170
        %v1248 = vpop.f32.mrf.mxu0
        %v1249 = vadd.f32 %v1189, %v1248
        %v1250 = vpop.f32.mrf.mxu0
        %1251 = vdwg.mxu0
        %vm1252 = vcmp.eq.s32.totalorder %v921, 0
        %v1253 = vsel %vm1252, 1, 0
        %1254 = vset.pattern.permute.xlu0 0
        %1255 = vperm.xlu0 %1254, %v1253
        %v1256 = vpop.permute.xlu0 %1255
        %vm1257 = vcmp.eq.s32.totalorder %v1256, 1
        %v1258 = vsel %vm1257, %v1249, 0.0
        %v1259 = vadd.f32 %v1258, 0.0
        %s1260 = scalar_lea.vmem %s10, 64
        %v1261 = vld [vmem:[%s1260] sm:$0xf]
        %v1262 = vld [vmem:[%s1260 + $0x4] sm:$0xf]
        %v1263 = vld [vmem:[%s1260 + $0x8] sm:$0xf]
        %v1264 = vld [vmem:[%s1260 + $0xc] sm:$0xf]
        %v1265 = vld [vmem:[%s1260 + $0x10] sm:$0xf]
        %v1266 = vld [vmem:[%s1260 + $0x14] sm:$0xf]
        %v1267 = vld [vmem:[%s1260 + $0x18] sm:$0xf]
        %v1268 = vld [vmem:[%s1260 + $0x1c] sm:$0xf]
        %v1269 = vld [vmem:[%s1260 + $0x20] sm:$0xf]
        %v1270 = vld [vmem:[%s1260 + $0x24] sm:$0xf]
        %v1271 = vld [vmem:[%s1260 + $0x28] sm:$0xf]
        %v1272 = vld [vmem:[%s1260 + $0x2c] sm:$0xf]
        %v1273 = vld [vmem:[%s1260 + $0x30] sm:$0xf]
        %v1274 = vld [vmem:[%s1260 + $0x34] sm:$0xf]
        %v1275 = vld [vmem:[%s1260 + $0x38] sm:$0xf]
        %v1276 = vld [vmem:[%s1260 + $0x3c] sm:$0xf]
        %s1277 = scalar_lea.vmem %s14, 1
        %v1278 = vld [vmem:[%s1277] sm:$0x1]
        %v1280 = vperm.slane %v1278, 0
        %v1298 = vunpack.c.l.b16 %v1261
        %v1299 = vunpack.c.l.b16 %v1262
        %v1300 = vunpack.c.l.b16 %v1263
        %v1301 = vunpack.c.l.b16 %v1264
        %v1302 = vunpack.c.l.b16 %v1265
        %v1303 = vunpack.c.l.b16 %v1266
        %v1304 = vunpack.c.l.b16 %v1267
        %v1305 = vunpack.c.l.b16 %v1268
        %v1306 = vunpack.c.l.b16 %v1269
        %v1307 = vunpack.c.l.b16 %v1270
        %v1308 = vunpack.c.l.b16 %v1271
        %v1309 = vunpack.c.l.b16 %v1272
        %v1310 = vunpack.c.l.b16 %v1273
        %v1311 = vunpack.c.l.b16 %v1274
        %v1312 = vunpack.c.l.b16 %v1275
        %v1313 = vunpack.c.l.b16 %v1276
        %v1314 = vpack.c.b16 %v1299, %v1298
        %v1315 = vpack.c.b16 %v1301, %v1300
        %v1316 = vpack.c.b16 %v1303, %v1302
        %v1317 = vpack.c.b16 %v1305, %v1304
        %v1318 = vpack.c.b16 %v1307, %v1306
        %v1319 = vpack.c.b16 %v1309, %v1308
        %v1320 = vpack.c.b16 %v1311, %v1310
        %v1321 = vpack.c.b16 %v1313, %v1312
        %1330 = vmatpush.bf16.msra.mxu0 %v1321
        %1331 = vmatpush.bf16.msra.mxu0 %v1320
        %1332 = vmatpush.bf16.msra.mxu0 %v1319
        %1333 = vmatpush.bf16.msra.mxu0 %v1318
        %1334 = vmatpush.bf16.msra.mxu0 %v1317
        %1335 = vmatpush.bf16.msra.mxu0 %v1316
        %1336 = vmatpush.bf16.msra.mxu0 %v1315
        %1337 = vmatpush.bf16.msra.mxu0 %v1314
        %1338 = vmatmul.bf16.gmra.mxu0 %v920
        %v1339 = vpop.f32.mrf.mxu0
        %v1340 = vadd.f32 %v1280, %v1339
        %v1341 = vpop.f32.mrf.mxu0
        %1342 = vdwg.mxu0
        %v1343 = vmax.f32 %v1340, 0.0
        %v1344 = vpack.c.bf16 %v1343, %v1343
        %s1345 = scalar_lea.vmem %s11, 64
        %v1346 = vld [vmem:[%s1345] sm:$0xf]
        %v1347 = vld [vmem:[%s1345 + $0x4] sm:$0xf]
        %v1348 = vld [vmem:[%s1345 + $0x8] sm:$0xf]
        %v1349 = vld [vmem:[%s1345 + $0xc] sm:$0xf]
        %v1350 = vld [vmem:[%s1345 + $0x10] sm:$0xf]
        %v1351 = vld [vmem:[%s1345 + $0x14] sm:$0xf]
        %v1352 = vld [vmem:[%s1345 + $0x18] sm:$0xf]
        %v1353 = vld [vmem:[%s1345 + $0x1c] sm:$0xf]
        %v1354 = vld [vmem:[%s1345 + $0x20] sm:$0xf]
        %v1355 = vld [vmem:[%s1345 + $0x24] sm:$0xf]
        %v1356 = vld [vmem:[%s1345 + $0x28] sm:$0xf]
        %v1357 = vld [vmem:[%s1345 + $0x2c] sm:$0xf]
        %v1358 = vld [vmem:[%s1345 + $0x30] sm:$0xf]
        %v1359 = vld [vmem:[%s1345 + $0x34] sm:$0xf]
        %v1360 = vld [vmem:[%s1345 + $0x38] sm:$0xf]
        %v1361 = vld [vmem:[%s1345 + $0x3c] sm:$0xf]
        %s1362 = scalar_lea.vmem %s15, 1
        %v1363 = vld [vmem:[%s1362] sm:$0x1]
        %v1365 = vperm.slane %v1363, 0
        %v1383 = vunpack.c.l.b16 %v1346
        %v1384 = vunpack.c.l.b16 %v1347
        %v1385 = vunpack.c.l.b16 %v1348
        %v1386 = vunpack.c.l.b16 %v1349
        %v1387 = vunpack.c.l.b16 %v1350
        %v1388 = vunpack.c.l.b16 %v1351
        %v1389 = vunpack.c.l.b16 %v1352
        %v1390 = vunpack.c.l.b16 %v1353
        %v1391 = vunpack.c.l.b16 %v1354
        %v1392 = vunpack.c.l.b16 %v1355
        %v1393 = vunpack.c.l.b16 %v1356
        %v1394 = vunpack.c.l.b16 %v1357
        %v1395 = vunpack.c.l.b16 %v1358
        %v1396 = vunpack.c.l.b16 %v1359
        %v1397 = vunpack.c.l.b16 %v1360
        %v1398 = vunpack.c.l.b16 %v1361
        %v1399 = vpack.c.b16 %v1384, %v1383
        %v1400 = vpack.c.b16 %v1386, %v1385
        %v1401 = vpack.c.b16 %v1388, %v1387
        %v1402 = vpack.c.b16 %v1390, %v1389
        %v1403 = vpack.c.b16 %v1392, %v1391
        %v1404 = vpack.c.b16 %v1394, %v1393
        %v1405 = vpack.c.b16 %v1396, %v1395
        %v1406 = vpack.c.b16 %v1398, %v1397
        %1415 = vmatpush.bf16.msra.mxu0 %v1406
        %1416 = vmatpush.bf16.msra.mxu0 %v1405
        %1417 = vmatpush.bf16.msra.mxu0 %v1404
        %1418 = vmatpush.bf16.msra.mxu0 %v1403
        %1419 = vmatpush.bf16.msra.mxu0 %v1402
        %1420 = vmatpush.bf16.msra.mxu0 %v1401
        %1421 = vmatpush.bf16.msra.mxu0 %v1400
        %1422 = vmatpush.bf16.msra.mxu0 %v1399
        %1423 = vmatmul.bf16.gmra.mxu0 %v1344
        %v1424 = vpop.f32.mrf.mxu0
        %v1425 = vadd.f32 %v1365, %v1424
        %v1426 = vpop.f32.mrf.mxu0
        %1427 = vdwg.mxu0
        %v1428 = vmax.f32 %v1425, 0.0
        %v1429 = vpack.c.bf16 %v1428, %v1428
        %s1430 = scalar_lea.vmem %s12, 64
        %v1431 = vld [vmem:[%s1430] sm:$0xf]
        %v1432 = vld [vmem:[%s1430 + $0x4] sm:$0xf]
        %v1433 = vld [vmem:[%s1430 + $0x8] sm:$0xf]
        %v1434 = vld [vmem:[%s1430 + $0xc] sm:$0xf]
        %v1435 = vld [vmem:[%s1430 + $0x10] sm:$0xf]
        %v1436 = vld [vmem:[%s1430 + $0x14] sm:$0xf]
        %v1437 = vld [vmem:[%s1430 + $0x18] sm:$0xf]
        %v1438 = vld [vmem:[%s1430 + $0x1c] sm:$0xf]
        %v1439 = vld [vmem:[%s1430 + $0x20] sm:$0xf]
        %v1440 = vld [vmem:[%s1430 + $0x24] sm:$0xf]
        %v1441 = vld [vmem:[%s1430 + $0x28] sm:$0xf]
        %v1442 = vld [vmem:[%s1430 + $0x2c] sm:$0xf]
        %v1443 = vld [vmem:[%s1430 + $0x30] sm:$0xf]
        %v1444 = vld [vmem:[%s1430 + $0x34] sm:$0xf]
        %v1445 = vld [vmem:[%s1430 + $0x38] sm:$0xf]
        %v1446 = vld [vmem:[%s1430 + $0x3c] sm:$0xf]
        %s1447 = scalar_lea.vmem %s16, 1
        %v1448 = vld [vmem:[%s1447] sm:$0x1]
        %v1450 = vperm.slane %v1448, 0
        %v1468 = vunpack.c.l.b16 %v1431
        %v1469 = vunpack.c.l.b16 %v1432
        %v1470 = vunpack.c.l.b16 %v1433
        %v1471 = vunpack.c.l.b16 %v1434
        %v1472 = vunpack.c.l.b16 %v1435
        %v1473 = vunpack.c.l.b16 %v1436
        %v1474 = vunpack.c.l.b16 %v1437
        %v1475 = vunpack.c.l.b16 %v1438
        %v1476 = vunpack.c.l.b16 %v1439
        %v1477 = vunpack.c.l.b16 %v1440
        %v1478 = vunpack.c.l.b16 %v1441
        %v1479 = vunpack.c.l.b16 %v1442
        %v1480 = vunpack.c.l.b16 %v1443
        %v1481 = vunpack.c.l.b16 %v1444
        %v1482 = vunpack.c.l.b16 %v1445
        %v1483 = vunpack.c.l.b16 %v1446
        %v1484 = vpack.c.b16 %v1469, %v1468
        %v1485 = vpack.c.b16 %v1471, %v1470
        %v1486 = vpack.c.b16 %v1473, %v1472
        %v1487 = vpack.c.b16 %v1475, %v1474
        %v1488 = vpack.c.b16 %v1477, %v1476
        %v1489 = vpack.c.b16 %v1479, %v1478
        %v1490 = vpack.c.b16 %v1481, %v1480
        %v1491 = vpack.c.b16 %v1483, %v1482
        %1500 = vmatpush.bf16.msra.mxu0 %v1491
        %1501 = vmatpush.bf16.msra.mxu0 %v1490
        %1502 = vmatpush.bf16.msra.mxu0 %v1489
        %1503 = vmatpush.bf16.msra.mxu0 %v1488
        %1504 = vmatpush.bf16.msra.mxu0 %v1487
        %1505 = vmatpush.bf16.msra.mxu0 %v1486
        %1506 = vmatpush.bf16.msra.mxu0 %v1485
        %1507 = vmatpush.bf16.msra.mxu0 %v1484
        %1508 = vmatmul.bf16.gmra.mxu0 %v1429
        %v1509 = vpop.f32.mrf.mxu0
        %v1510 = vadd.f32 %v1450, %v1509
        %v1511 = vpop.f32.mrf.mxu0
        %1512 = vdwg.mxu0
        %v1513 = vmax.f32 %v1510, 0.0
        %v1514 = vpack.c.bf16 %v1513, %v1513
        %s1515 = scalar_lea.vmem %s13, 64
        %v1516 = vld [vmem:[%s1515] sm:$0xf]
        %v1517 = vld [vmem:[%s1515 + $0x4] sm:$0xf]
        %v1518 = vld [vmem:[%s1515 + $0x8] sm:$0xf]
        %v1519 = vld [vmem:[%s1515 + $0xc] sm:$0xf]
        %v1520 = vld [vmem:[%s1515 + $0x10] sm:$0xf]
        %v1521 = vld [vmem:[%s1515 + $0x14] sm:$0xf]
        %v1522 = vld [vmem:[%s1515 + $0x18] sm:$0xf]
        %v1523 = vld [vmem:[%s1515 + $0x1c] sm:$0xf]
        %v1524 = vld [vmem:[%s1515 + $0x20] sm:$0xf]
        %v1525 = vld [vmem:[%s1515 + $0x24] sm:$0xf]
        %v1526 = vld [vmem:[%s1515 + $0x28] sm:$0xf]
        %v1527 = vld [vmem:[%s1515 + $0x2c] sm:$0xf]
        %v1528 = vld [vmem:[%s1515 + $0x30] sm:$0xf]
        %v1529 = vld [vmem:[%s1515 + $0x34] sm:$0xf]
        %v1530 = vld [vmem:[%s1515 + $0x38] sm:$0xf]
        %v1531 = vld [vmem:[%s1515 + $0x3c] sm:$0xf]
        %s1532 = scalar_lea.vmem %s17, 1
        %v1533 = vld [vmem:[%s1532] sm:$0x1]
        %v1535 = vperm.slane %v1533, 0
        %v1553 = vunpack.c.l.b16 %v1516
        %v1554 = vunpack.c.l.b16 %v1517
        %v1555 = vunpack.c.l.b16 %v1518
        %v1556 = vunpack.c.l.b16 %v1519
        %v1557 = vunpack.c.l.b16 %v1520
        %v1558 = vunpack.c.l.b16 %v1521
        %v1559 = vunpack.c.l.b16 %v1522
        %v1560 = vunpack.c.l.b16 %v1523
        %v1561 = vunpack.c.l.b16 %v1524
        %v1562 = vunpack.c.l.b16 %v1525
        %v1563 = vunpack.c.l.b16 %v1526
        %v1564 = vunpack.c.l.b16 %v1527
        %v1565 = vunpack.c.l.b16 %v1528
        %v1566 = vunpack.c.l.b16 %v1529
        %v1567 = vunpack.c.l.b16 %v1530
        %v1568 = vunpack.c.l.b16 %v1531
        %v1569 = vpack.c.b16 %v1554, %v1553
        %v1570 = vpack.c.b16 %v1556, %v1555
        %v1571 = vpack.c.b16 %v1558, %v1557
        %v1572 = vpack.c.b16 %v1560, %v1559
        %v1573 = vpack.c.b16 %v1562, %v1561
        %v1574 = vpack.c.b16 %v1564, %v1563
        %v1575 = vpack.c.b16 %v1566, %v1565
        %v1576 = vpack.c.b16 %v1568, %v1567
        %1585 = vmatpush.bf16.msra.mxu0 %v1576
        %1586 = vmatpush.bf16.msra.mxu0 %v1575
        %1587 = vmatpush.bf16.msra.mxu0 %v1574
        %1588 = vmatpush.bf16.msra.mxu0 %v1573
        %1589 = vmatpush.bf16.msra.mxu0 %v1572
        %1590 = vmatpush.bf16.msra.mxu0 %v1571
        %1591 = vmatpush.bf16.msra.mxu0 %v1570
        %1592 = vmatpush.bf16.msra.mxu0 %v1569
        %1593 = vmatmul.bf16.gmra.mxu0 %v1514
        %v1594 = vpop.f32.mrf.mxu0
        %v1595 = vadd.f32 %v1535, %v1594
        %v1596 = vpop.f32.mrf.mxu0
        %1597 = vdwg.mxu0
        %vm1598 = vcmp.eq.s32.totalorder %v921, 1
        %v1599 = vsel %vm1598, 1, 0
        %1600 = vset.pattern.permute.xlu0 0
        %1601 = vperm.xlu0 %1600, %v1599
        %v1602 = vpop.permute.xlu0 %1601
        %vm1603 = vcmp.eq.s32.totalorder %v1602, 1
        %v1604 = vsel %vm1603, %v1595, 0.0
        %v1605 = vadd.f32 %v1259, %v1604
        %s1606 = scalar_lea.vmem %s10, 128
        %v1607 = vld [vmem:[%s1606] sm:$0xf]
        %v1608 = vld [vmem:[%s1606 + $0x4] sm:$0xf]
        %v1609 = vld [vmem:[%s1606 + $0x8] sm:$0xf]
        %v1610 = vld [vmem:[%s1606 + $0xc] sm:$0xf]
        %v1611 = vld [vmem:[%s1606 + $0x10] sm:$0xf]
        %v1612 = vld [vmem:[%s1606 + $0x14] sm:$0xf]
        %v1613 = vld [vmem:[%s1606 + $0x18] sm:$0xf]
        %v1614 = vld [vmem:[%s1606 + $0x1c] sm:$0xf]
        %v1615 = vld [vmem:[%s1606 + $0x20] sm:$0xf]
        %v1616 = vld [vmem:[%s1606 + $0x24] sm:$0xf]
        %v1617 = vld [vmem:[%s1606 + $0x28] sm:$0xf]
        %v1618 = vld [vmem:[%s1606 + $0x2c] sm:$0xf]
        %v1619 = vld [vmem:[%s1606 + $0x30] sm:$0xf]
        %v1620 = vld [vmem:[%s1606 + $0x34] sm:$0xf]
        %v1621 = vld [vmem:[%s1606 + $0x38] sm:$0xf]
        %v1622 = vld [vmem:[%s1606 + $0x3c] sm:$0xf]
        %s1623 = scalar_lea.vmem %s14, 2
        %v1624 = vld [vmem:[%s1623] sm:$0x1]
        %v1626 = vperm.slane %v1624, 0
        %v1644 = vunpack.c.l.b16 %v1607
        %v1645 = vunpack.c.l.b16 %v1608
        %v1646 = vunpack.c.l.b16 %v1609
        %v1647 = vunpack.c.l.b16 %v1610
        %v1648 = vunpack.c.l.b16 %v1611
        %v1649 = vunpack.c.l.b16 %v1612
        %v1650 = vunpack.c.l.b16 %v1613
        %v1651 = vunpack.c.l.b16 %v1614
        %v1652 = vunpack.c.l.b16 %v1615
        %v1653 = vunpack.c.l.b16 %v1616
        %v1654 = vunpack.c.l.b16 %v1617
        %v1655 = vunpack.c.l.b16 %v1618
        %v1656 = vunpack.c.l.b16 %v1619
        %v1657 = vunpack.c.l.b16 %v1620
        %v1658 = vunpack.c.l.b16 %v1621
        %v1659 = vunpack.c.l.b16 %v1622
        %v1660 = vpack.c.b16 %v1645, %v1644
        %v1661 = vpack.c.b16 %v1647, %v1646
        %v1662 = vpack.c.b16 %v1649, %v1648
        %v1663 = vpack.c.b16 %v1651, %v1650
        %v1664 = vpack.c.b16 %v1653, %v1652
        %v1665 = vpack.c.b16 %v1655, %v1654
        %v1666 = vpack.c.b16 %v1657, %v1656
        %v1667 = vpack.c.b16 %v1659, %v1658
        %1676 = vmatpush.bf16.msra.mxu0 %v1667
        %1677 = vmatpush.bf16.msra.mxu0 %v1666
        %1678 = vmatpush.bf16.msra.mxu0 %v1665
        %1679 = vmatpush.bf16.msra.mxu0 %v1664
        %1680 = vmatpush.bf16.msra.mxu0 %v1663
        %1681 = vmatpush.bf16.msra.mxu0 %v1662
        %1682 = vmatpush.bf16.msra.mxu0 %v1661
        %1683 = vmatpush.bf16.msra.mxu0 %v1660
        %1684 = vmatmul.bf16.gmra.mxu0 %v920
        %v1685 = vpop.f32.mrf.mxu0
        %v1686 = vadd.f32 %v1626, %v1685
        %v1687 = vpop.f32.mrf.mxu0
        %1688 = vdwg.mxu0
        %v1689 = vmax.f32 %v1686, 0.0
        %v1690 = vpack.c.bf16 %v1689, %v1689
        %s1691 = scalar_lea.vmem %s11, 128
        %v1692 = vld [vmem:[%s1691] sm:$0xf]
        %v1693 = vld [vmem:[%s1691 + $0x4] sm:$0xf]
        %v1694 = vld [vmem:[%s1691 + $0x8] sm:$0xf]
        %v1695 = vld [vmem:[%s1691 + $0xc] sm:$0xf]
        %v1696 = vld [vmem:[%s1691 + $0x10] sm:$0xf]
        %v1697 = vld [vmem:[%s1691 + $0x14] sm:$0xf]
        %v1698 = vld [vmem:[%s1691 + $0x18] sm:$0xf]
        %v1699 = vld [vmem:[%s1691 + $0x1c] sm:$0xf]
        %v1700 = vld [vmem:[%s1691 + $0x20] sm:$0xf]
        %v1701 = vld [vmem:[%s1691 + $0x24] sm:$0xf]
        %v1702 = vld [vmem:[%s1691 + $0x28] sm:$0xf]
        %v1703 = vld [vmem:[%s1691 + $0x2c] sm:$0xf]
        %v1704 = vld [vmem:[%s1691 + $0x30] sm:$0xf]
        %v1705 = vld [vmem:[%s1691 + $0x34] sm:$0xf]
        %v1706 = vld [vmem:[%s1691 + $0x38] sm:$0xf]
        %v1707 = vld [vmem:[%s1691 + $0x3c] sm:$0xf]
        %s1708 = scalar_lea.vmem %s15, 2
        %v1709 = vld [vmem:[%s1708] sm:$0x1]
        %v1711 = vperm.slane %v1709, 0
        %v1729 = vunpack.c.l.b16 %v1692
        %v1730 = vunpack.c.l.b16 %v1693
        %v1731 = vunpack.c.l.b16 %v1694
        %v1732 = vunpack.c.l.b16 %v1695
        %v1733 = vunpack.c.l.b16 %v1696
        %v1734 = vunpack.c.l.b16 %v1697
        %v1735 = vunpack.c.l.b16 %v1698
        %v1736 = vunpack.c.l.b16 %v1699
        %v1737 = vunpack.c.l.b16 %v1700
        %v1738 = vunpack.c.l.b16 %v1701
        %v1739 = vunpack.c.l.b16 %v1702
        %v1740 = vunpack.c.l.b16 %v1703
        %v1741 = vunpack.c.l.b16 %v1704
        %v1742 = vunpack.c.l.b16 %v1705
        %v1743 = vunpack.c.l.b16 %v1706
        %v1744 = vunpack.c.l.b16 %v1707
        %v1745 = vpack.c.b16 %v1730, %v1729
        %v1746 = vpack.c.b16 %v1732, %v1731
        %v1747 = vpack.c.b16 %v1734, %v1733
        %v1748 = vpack.c.b16 %v1736, %v1735
        %v1749 = vpack.c.b16 %v1738, %v1737
        %v1750 = vpack.c.b16 %v1740, %v1739
        %v1751 = vpack.c.b16 %v1742, %v1741
        %v1752 = vpack.c.b16 %v1744, %v1743
        %1761 = vmatpush.bf16.msra.mxu0 %v1752
        %1762 = vmatpush.bf16.msra.mxu0 %v1751
        %1763 = vmatpush.bf16.msra.mxu0 %v1750
        %1764 = vmatpush.bf16.msra.mxu0 %v1749
        %1765 = vmatpush.bf16.msra.mxu0 %v1748
        %1766 = vmatpush.bf16.msra.mxu0 %v1747
        %1767 = vmatpush.bf16.msra.mxu0 %v1746
        %1768 = vmatpush.bf16.msra.mxu0 %v1745
        %1769 = vmatmul.bf16.gmra.mxu0 %v1690
        %v1770 = vpop.f32.mrf.mxu0
        %v1771 = vadd.f32 %v1711, %v1770
        %v1772 = vpop.f32.mrf.mxu0
        %1773 = vdwg.mxu0
        %v1774 = vmax.f32 %v1771, 0.0
        %v1775 = vpack.c.bf16 %v1774, %v1774
        %s1776 = scalar_lea.vmem %s12, 128
        %v1777 = vld [vmem:[%s1776] sm:$0xf]
        %v1778 = vld [vmem:[%s1776 + $0x4] sm:$0xf]
        %v1779 = vld [vmem:[%s1776 + $0x8] sm:$0xf]
        %v1780 = vld [vmem:[%s1776 + $0xc] sm:$0xf]
        %v1781 = vld [vmem:[%s1776 + $0x10] sm:$0xf]
        %v1782 = vld [vmem:[%s1776 + $0x14] sm:$0xf]
        %v1783 = vld [vmem:[%s1776 + $0x18] sm:$0xf]
        %v1784 = vld [vmem:[%s1776 + $0x1c] sm:$0xf]
        %v1785 = vld [vmem:[%s1776 + $0x20] sm:$0xf]
        %v1786 = vld [vmem:[%s1776 + $0x24] sm:$0xf]
        %v1787 = vld [vmem:[%s1776 + $0x28] sm:$0xf]
        %v1788 = vld [vmem:[%s1776 + $0x2c] sm:$0xf]
        %v1789 = vld [vmem:[%s1776 + $0x30] sm:$0xf]
        %v1790 = vld [vmem:[%s1776 + $0x34] sm:$0xf]
        %v1791 = vld [vmem:[%s1776 + $0x38] sm:$0xf]
        %v1792 = vld [vmem:[%s1776 + $0x3c] sm:$0xf]
        %s1793 = scalar_lea.vmem %s16, 2
        %v1794 = vld [vmem:[%s1793] sm:$0x1]
        %v1796 = vperm.slane %v1794, 0
        %v1814 = vunpack.c.l.b16 %v1777
        %v1815 = vunpack.c.l.b16 %v1778
        %v1816 = vunpack.c.l.b16 %v1779
        %v1817 = vunpack.c.l.b16 %v1780
        %v1818 = vunpack.c.l.b16 %v1781
        %v1819 = vunpack.c.l.b16 %v1782
        %v1820 = vunpack.c.l.b16 %v1783
        %v1821 = vunpack.c.l.b16 %v1784
        %v1822 = vunpack.c.l.b16 %v1785
        %v1823 = vunpack.c.l.b16 %v1786
        %v1824 = vunpack.c.l.b16 %v1787
        %v1825 = vunpack.c.l.b16 %v1788
        %v1826 = vunpack.c.l.b16 %v1789
        %v1827 = vunpack.c.l.b16 %v1790
        %v1828 = vunpack.c.l.b16 %v1791
        %v1829 = vunpack.c.l.b16 %v1792
        %v1830 = vpack.c.b16 %v1815, %v1814
        %v1831 = vpack.c.b16 %v1817, %v1816
        %v1832 = vpack.c.b16 %v1819, %v1818
        %v1833 = vpack.c.b16 %v1821, %v1820
        %v1834 = vpack.c.b16 %v1823, %v1822
        %v1835 = vpack.c.b16 %v1825, %v1824
        %v1836 = vpack.c.b16 %v1827, %v1826
        %v1837 = vpack.c.b16 %v1829, %v1828
        %1846 = vmatpush.bf16.msra.mxu0 %v1837
        %1847 = vmatpush.bf16.msra.mxu0 %v1836
        %1848 = vmatpush.bf16.msra.mxu0 %v1835
        %1849 = vmatpush.bf16.msra.mxu0 %v1834
        %1850 = vmatpush.bf16.msra.mxu0 %v1833
        %1851 = vmatpush.bf16.msra.mxu0 %v1832
        %1852 = vmatpush.bf16.msra.mxu0 %v1831
        %1853 = vmatpush.bf16.msra.mxu0 %v1830
        %1854 = vmatmul.bf16.gmra.mxu0 %v1775
        %v1855 = vpop.f32.mrf.mxu0
        %v1856 = vadd.f32 %v1796, %v1855
        %v1857 = vpop.f32.mrf.mxu0
        %1858 = vdwg.mxu0
        %v1859 = vmax.f32 %v1856, 0.0
        %v1860 = vpack.c.bf16 %v1859, %v1859
        %s1861 = scalar_lea.vmem %s13, 128
        %v1862 = vld [vmem:[%s1861] sm:$0xf]
        %v1863 = vld [vmem:[%s1861 + $0x4] sm:$0xf]
        %v1864 = vld [vmem:[%s1861 + $0x8] sm:$0xf]
        %v1865 = vld [vmem:[%s1861 + $0xc] sm:$0xf]
        %v1866 = vld [vmem:[%s1861 + $0x10] sm:$0xf]
        %v1867 = vld [vmem:[%s1861 + $0x14] sm:$0xf]
        %v1868 = vld [vmem:[%s1861 + $0x18] sm:$0xf]
        %v1869 = vld [vmem:[%s1861 + $0x1c] sm:$0xf]
        %v1870 = vld [vmem:[%s1861 + $0x20] sm:$0xf]
        %v1871 = vld [vmem:[%s1861 + $0x24] sm:$0xf]
        %v1872 = vld [vmem:[%s1861 + $0x28] sm:$0xf]
        %v1873 = vld [vmem:[%s1861 + $0x2c] sm:$0xf]
        %v1874 = vld [vmem:[%s1861 + $0x30] sm:$0xf]
        %v1875 = vld [vmem:[%s1861 + $0x34] sm:$0xf]
        %v1876 = vld [vmem:[%s1861 + $0x38] sm:$0xf]
        %v1877 = vld [vmem:[%s1861 + $0x3c] sm:$0xf]
        %s1878 = scalar_lea.vmem %s17, 2
        %v1879 = vld [vmem:[%s1878] sm:$0x1]
        %v1881 = vperm.slane %v1879, 0
        %v1899 = vunpack.c.l.b16 %v1862
        %v1900 = vunpack.c.l.b16 %v1863
        %v1901 = vunpack.c.l.b16 %v1864
        %v1902 = vunpack.c.l.b16 %v1865
        %v1903 = vunpack.c.l.b16 %v1866
        %v1904 = vunpack.c.l.b16 %v1867
        %v1905 = vunpack.c.l.b16 %v1868
        %v1906 = vunpack.c.l.b16 %v1869
        %v1907 = vunpack.c.l.b16 %v1870
        %v1908 = vunpack.c.l.b16 %v1871
        %v1909 = vunpack.c.l.b16 %v1872
        %v1910 = vunpack.c.l.b16 %v1873
        %v1911 = vunpack.c.l.b16 %v1874
        %v1912 = vunpack.c.l.b16 %v1875
        %v1913 = vunpack.c.l.b16 %v1876
        %v1914 = vunpack.c.l.b16 %v1877
        %v1915 = vpack.c.b16 %v1900, %v1899
        %v1916 = vpack.c.b16 %v1902, %v1901
        %v1917 = vpack.c.b16 %v1904, %v1903
        %v1918 = vpack.c.b16 %v1906, %v1905
        %v1919 = vpack.c.b16 %v1908, %v1907
        %v1920 = vpack.c.b16 %v1910, %v1909
        %v1921 = vpack.c.b16 %v1912, %v1911
        %v1922 = vpack.c.b16 %v1914, %v1913
        %1931 = vmatpush.bf16.msra.mxu0 %v1922
        %1932 = vmatpush.bf16.msra.mxu0 %v1921
        %1933 = vmatpush.bf16.msra.mxu0 %v1920
        %1934 = vmatpush.bf16.msra.mxu0 %v1919
        %1935 = vmatpush.bf16.msra.mxu0 %v1918
        %1936 = vmatpush.bf16.msra.mxu0 %v1917
        %1937 = vmatpush.bf16.msra.mxu0 %v1916
        %1938 = vmatpush.bf16.msra.mxu0 %v1915
        %1939 = vmatmul.bf16.gmra.mxu0 %v1860
        %v1940 = vpop.f32.mrf.mxu0
        %v1941 = vadd.f32 %v1881, %v1940
        %v1942 = vpop.f32.mrf.mxu0
        %1943 = vdwg.mxu0
        %vm1944 = vcmp.eq.s32.totalorder %v921, 2
        %v1945 = vsel %vm1944, 1, 0
        %1946 = vset.pattern.permute.xlu0 0
        %1947 = vperm.xlu0 %1946, %v1945
        %v1948 = vpop.permute.xlu0 %1947
        %vm1949 = vcmp.eq.s32.totalorder %v1948, 1
        %v1950 = vsel %vm1949, %v1941, 0.0
        %v1951 = vadd.f32 %v1605, %v1950
        %1952 = vst [vmem:[%s579] sm:$0xff] %v1951
        %s1953 = sand.u32 %s428, 1
        %s1954 = scalar_lea.sflag [#allocation3], %s1953
        %s1955 = sand.u32 %s428, 1
        %s1956 = smul.addr %s1955, 8
        %s1957 = scalar_lea.vmem [#allocation2], %s1956
        // Predicated region
        $region93: #{mapping_network_forward.1} parent=91 // pred_check
          %p1958 = pneg %p438
        $region94: #{mapping_network_forward.1} parent=91 // pred_check_branch
          %1960 = sbr.rel (%p1958) target = $region96
        $region95: #{mapping_network_forward.1} parent=91 // pred_region
          %1962 = vsyncadd %s1954, 0
          %s1963 = smul.addr %s32, 8
          %s1964 = scalar_lea.hbm %s18, %s1963
          %s1966 = sshll.u32 %s1957, 4
          %s1967 = int_to_ptr.vmem [resolvable:$true] %s1966
          %s1968 = sshll.u32 %s1964, 4
          %s1969 = int_to_ptr.hbm [resolvable:$true] %s1968
          %1971 = dma.vmem_to_hbm [thread:$0]  %s1967, 128, %s1969, %s1954
        $region96: #{mapping_network_forward.1} parent=91 // pred_fallthru
          _
      $region92: #{mapping_network_forward.1} parent=5 // pred_fallthru
        _
      %p1972 = scmp.le.s32.totalorder 2, %s27
      // Predicated region
      $region97: #{mapping_network_forward.1} parent=5 // pred_check
        %p1973 = pneg %p1972
      $region98: #{mapping_network_forward.1} parent=5 // pred_check_branch
        %1975 = sbr.rel (%p1973) target = $region100
      $region99: #{mapping_network_forward.1} parent=5 // pred_region
        %s1976 = ssub.s32 %s27, 2
        // Predicated region
        $region101: #{mapping_network_forward.1} parent=99 // pred_check
          %p1977 = pneg %p444
        $region102: #{mapping_network_forward.1} parent=99 // pred_check_branch
          %1979 = sbr.rel (%p1977) target = $region104
        $region103: #{mapping_network_forward.1} parent=99 // pred_region
          %s1980 = sand.u32 %s429, 1
          %s1981 = scalar_lea.sflag [#allocation3], %s1980
          %s1982 = sand.u32 %s429, 1
          %s1983 = smul.addr %s1982, 8
          %s1984 = scalar_lea.vmem [#allocation2], %s1983
          %1986 = dma.done %s1981, 128
        $region104: #{mapping_network_forward.1} parent=99 // pred_fallthru
          _
      $region100: #{mapping_network_forward.1} parent=5 // pred_fallthru
        _
    $region6: #{mapping_network_forward.1} parent=1 // loop_footer
      %s31 = sadd.s32 1, %s27
    $region7: #{mapping_network_forward.1} parent=1 // loop_footer_branch
      %26 = sbr.rel target = $region3
    $region8: #{mapping_network_forward.1} parent=1 // loop_exit
      _
    %1987 = vsyncpa [#allocation3], 1
    %s1988 = scalar_lea.sflag [#allocation3], 1
    %1989 = vsyncpa %s1988, 1

</llo_original>
